<compile_context>
chip_gen: v7x
topology: tpu7x:2x2x1
jax: 0.10.0
libtpu: 0.0.40
codegen_flags: <defaults>
</compile_context>

<pallas_src>
import jax
import jax.numpy as jnp
from jax.experimental import pallas as pl
from jax.experimental.pallas import tpu as pltpu

# ----------------------------- config (small, synthetic) ----------------------
BATCH = 2
CHANNELS = 3
IMAGE = 16
PATCH = 8
GRID_HW = IMAGE // PATCH              # 2
NUM_PATCHES = GRID_HW * GRID_HW       # 4
SEQ = NUM_PATCHES + 1                 # 5 (CLS token)
SEQ_PAD = 8                           # pad rows per batch to a full sublane group
HIDDEN = 32
HEADS = 4
HEAD_DIM = HIDDEN // HEADS            # 8
MLP = 64
MLP_PAD = 128                         # lane-dense fc1 output
QKV_PAD = 4 * HIDDEN                  # 128 = q|k|v|zero-pad  -> full-lane matmul out
KPATCH = CHANNELS * PATCH * PATCH     # 192
LAYERS = 2
EPS = 1e-5
DTYPE = jnp.float32


# ----------------------------- helpers ----------------------------------------
def _ln_rows(x, g, b, eps=EPS):
    """Row-wise LayerNorm on f32 values; g/b shape [1, D] (broadcast over rows)."""
    mean = jnp.mean(x, axis=-1, keepdims=True)
    var = jnp.mean(jnp.square(x - mean), axis=-1, keepdims=True)
    return (x - mean) * jax.lax.rsqrt(var + eps) * g + b


def patchify(x):
    """NCHW [B,C,H,W] -> [B, NUM_PATCHES, C*P*P] (Conv2d(stride=patch) as matmul)."""
    B = x.shape[0]
    x = x.reshape(B, CHANNELS, GRID_HW, PATCH, GRID_HW, PATCH)
    x = jnp.transpose(x, (0, 2, 4, 1, 3, 5))            # [B, gh, gw, C, P, P]
    return x.reshape(B, NUM_PATCHES, KPATCH)


# ----------------------------- fused Pallas kernel -----------------------------
def _clip_fused_kernel(patch_rows_ref, patch_w_ref, cls_pos_ref, gln_ref,
                       ln_ref, qkv_w_ref, qkv_b_ref, o_w_ref, o_b_ref,
                       fc1_w_ref, fc1_b_ref, fc2_w_ref, fc2_b_ref,
                       out_ref, h_ref):
    layer = pl.program_id(1)
    gln = gln_ref[...]            # [4, H] : pre_g, pre_b, post_g, post_b
    ln = ln_ref[...]              # [4, H] : ln1_g, ln1_b, ln2_g, ln2_b (this layer)

    # ---- embeddings + pre-LN (first layer step only; per-batch block) ----
    @pl.when(layer == 0)
    def _embed():
        emb = jnp.dot(patch_rows_ref[...], patch_w_ref[...],
                      preferred_element_type=jnp.float32)        # [S_PAD, H]
        h0 = emb + cls_pos_ref[...]                              # CLS + pos folded in
        h_ref[...] = _ln_rows(h0, gln[0:1, :], gln[1:2, :])

    h = h_ref[...]                                               # [S_PAD, H] f32

    # ---- self-attention block (pre-LN) ----
    hn = _ln_rows(h, ln[0:1, :], ln[1:2, :])
    qkv = jnp.dot(hn, qkv_w_ref[...],
                  preferred_element_type=jnp.float32) + qkv_b_ref[...]   # [S_PAD, 128]
    scale = jnp.float32(HEAD_DIM ** -0.5)
    key_valid = jax.lax.broadcasted_iota(jnp.int32, (SEQ_PAD, SEQ_PAD), 1) < SEQ
    head_outs = []
    for hd in range(HEADS):                                      # small, fully unrolled
        q = qkv[:, hd * HEAD_DIM:(hd + 1) * HEAD_DIM] * scale
        k = qkv[:, HIDDEN + hd * HEAD_DIM:HIDDEN + (hd + 1) * HEAD_DIM]
        v = qkv[:, 2 * HIDDEN + hd * HEAD_DIM:2 * HIDDEN + (hd + 1) * HEAD_DIM]
        s = jax.lax.dot_general(q, k, (((1,), (1,)), ((), ())),
                                preferred_element_type=jnp.float32)      # [S_PAD,S_PAD]
        s = jnp.where(key_valid, s, jnp.float32(-1e9))           # mask padded keys
        s = s - jnp.max(s, axis=-1, keepdims=True)
        p = jnp.exp(s)
        p = p / jnp.sum(p, axis=-1, keepdims=True)
        head_outs.append(jnp.dot(p, v, preferred_element_type=jnp.float32))
    attn = jnp.concatenate(head_outs, axis=-1)                   # [S_PAD, H]
    attn = jnp.dot(attn, o_w_ref[...],
                   preferred_element_type=jnp.float32) + o_b_ref[...]
    h = h + attn

    # ---- MLP block (pre-LN, quick_gelu) ----
    hn = _ln_rows(h, ln[2:3, :], ln[3:4, :])
    t = jnp.dot(hn, fc1_w_ref[...],
                preferred_element_type=jnp.float32) + fc1_b_ref[...]     # [S_PAD, 128]
    t = t * jax.nn.sigmoid(1.702 * t)                            # quick_gelu
    t = jnp.dot(t, fc2_w_ref[...],
                preferred_element_type=jnp.float32) + fc2_b_ref[...]     # [S_PAD, H]
    h = h + t

    h_ref[...] = h                                               # carry to next layer

    # ---- pooler: post-LN (only CLS row is consumed outside) ----
    @pl.when(layer == pl.num_programs(1) - 1)
    def _pool():
        out_ref[...] = _ln_rows(h, gln[2:3, :], gln[3:4, :]).astype(out_ref.dtype)


# ----------------------------- wrapper ------------------------------------------
def clip_forward(params, x):
    B = x.shape[0]
    patches = patchify(x)                                        # [B, NP, K]
    # patch rows laid out in the kernel's [SEQ_PAD, K] row layout (CLS/pad rows = 0)
    patch_rows = jnp.zeros((B, SEQ_PAD, KPATCH), DTYPE)
    patch_rows = patch_rows.at[:, 1:1 + NUM_PATCHES, :].set(patches)
    # CLS embedding + position embeddings folded into one additive term
    cls_pos = jnp.zeros((SEQ_PAD, HIDDEN), DTYPE)
    cls_pos = cls_pos.at[0, :].set(params["cls"] + params["pos"][0])
    cls_pos = cls_pos.at[1:SEQ, :].set(params["pos"][1:SEQ])
    cls_pos = jnp.broadcast_to(cls_pos[None], (B, SEQ_PAD, HIDDEN))

    bmap = lambda b, l: (b, 0, 0)     # per-batch blocks
    lmap = lambda b, l: (l, 0, 0)     # per-layer (stacked) weights
    cmap2 = lambda b, l: (0, 0)       # shared 2-D constants

    out = pl.pallas_call(
        _clip_fused_kernel,
        out_shape=jax.ShapeDtypeStruct((B, SEQ_PAD, HIDDEN), DTYPE),
        grid_spec=pltpu.PrefetchScalarGridSpec(
            num_scalar_prefetch=0,
            grid=(B, LAYERS),
            in_specs=[
                pl.BlockSpec((None, SEQ_PAD, KPATCH), bmap),      # patch_rows
                pl.BlockSpec((KPATCH, HIDDEN), cmap2),            # patch_w
                pl.BlockSpec((None, SEQ_PAD, HIDDEN), bmap),      # cls_pos
                pl.BlockSpec((4, HIDDEN), cmap2),                 # global LN (pre/post)
                pl.BlockSpec((None, 4, HIDDEN), lmap),            # per-layer LN params
                pl.BlockSpec((None, HIDDEN, QKV_PAD), lmap),      # qkv_w (fused, padded)
                pl.BlockSpec((None, 1, QKV_PAD), lmap),           # qkv_b
                pl.BlockSpec((None, HIDDEN, HIDDEN), lmap),       # o_w
                pl.BlockSpec((None, 1, HIDDEN), lmap),            # o_b
                pl.BlockSpec((None, HIDDEN, MLP_PAD), lmap),      # fc1_w (padded)
                pl.BlockSpec((None, 1, MLP_PAD), lmap),           # fc1_b
                pl.BlockSpec((None, MLP_PAD, HIDDEN), lmap),      # fc2_w (padded rows)
                pl.BlockSpec((None, 1, HIDDEN), lmap),            # fc2_b
            ],
            out_specs=pl.BlockSpec((None, SEQ_PAD, HIDDEN), bmap),
            scratch_shapes=[pltpu.VMEM((SEQ_PAD, HIDDEN), jnp.float32)],  # resident h
        ),
        compiler_params=pltpu.CompilerParams(
            dimension_semantics=("parallel", "arbitrary")),
    )(patch_rows, params["patch_w"], cls_pos, params["gln"],
      params["ln"], params["qkv_w"], params["qkv_b"],
      params["o_w"], params["o_b"],
      params["fc1_w"], params["fc1_b"], params["fc2_w"], params["fc2_b"])

    return out[:, 0, :]               # pooler_output = post_LN(CLS token)


# ----------------------------- params -------------------------------------------
def init_params(key):
    def normal(k, shape, std=0.02):
        return (std * jax.random.normal(k, shape)).astype(DTYPE)

    keys = jax.random.split(key, 5 + LAYERS)
    params = {
        "patch_w": normal(keys[0], (KPATCH, HIDDEN)),
        "cls": normal(keys[1], (HIDDEN,)),
        "pos": normal(keys[2], (SEQ, HIDDEN)),
        # rows: pre_ln_g, pre_ln_b, post_ln_g, post_ln_b
        "gln": jnp.stack([
            1.0 + 0.1 * jax.random.normal(keys[3], (HIDDEN,)),
            0.1 * jax.random.normal(keys[4], (HIDDEN,)),
            1.0 + 0.1 * jax.random.normal(jax.random.fold_in(keys[3], 1), (HIDDEN,)),
            0.1 * jax.random.normal(jax.random.fold_in(keys[4], 1), (HIDDEN,)),
        ]).astype(DTYPE),
    }
    ln_l, qkv_w_l, qkv_b_l, o_w_l, o_b_l = [], [], [], [], []
    fc1_w_l, fc1_b_l, fc2_w_l, fc2_b_l = [], [], [], []
    for li in range(LAYERS):
        lk = jax.random.split(keys[5 + li], 12)
        q_w, k_w, v_w = (normal(lk[i], (HIDDEN, HIDDEN)) for i in range(3))
        qkv_w_l.append(jnp.concatenate(
            [q_w, k_w, v_w, jnp.zeros((HIDDEN, QKV_PAD - 3 * HIDDEN), DTYPE)], axis=1))
        qkv_b_l.append(jnp.concatenate(
            [normal(lk[3], (3 * HIDDEN,)),
             jnp.zeros((QKV_PAD - 3 * HIDDEN,), DTYPE)]).reshape(1, QKV_PAD))
        o_w_l.append(normal(lk[7], (HIDDEN, HIDDEN)))
        o_b_l.append(normal(jax.random.fold_in(lk[7], 1), (HIDDEN,)).reshape(1, HIDDEN))
        fc1_w_l.append(jnp.concatenate(
            [normal(lk[4], (HIDDEN, MLP)), jnp.zeros((HIDDEN, MLP_PAD - MLP), DTYPE)],
            axis=1))
        fc1_b_l.append(jnp.concatenate(
            [normal(lk[5], (MLP,)), jnp.zeros((MLP_PAD - MLP,), DTYPE)]).reshape(1, MLP_PAD))
        fc2_w_l.append(jnp.concatenate(
            [normal(lk[6], (MLP, HIDDEN)), jnp.zeros((MLP_PAD - MLP, HIDDEN), DTYPE)],
            axis=0))
        fc2_b_l.append(normal(jax.random.fold_in(lk[6], 1), (HIDDEN,)).reshape(1, HIDDEN))
        ln_l.append(jnp.stack([
            1.0 + 0.1 * jax.random.normal(lk[8], (HIDDEN,)),
            0.1 * jax.random.normal(lk[9], (HIDDEN,)),
            1.0 + 0.1 * jax.random.normal(lk[10], (HIDDEN,)),
            0.1 * jax.random.normal(lk[11], (HIDDEN,)),
        ]).astype(DTYPE))
    params.update({
        "ln": jnp.stack(ln_l),
        "qkv_w": jnp.stack(qkv_w_l), "qkv_b": jnp.stack(qkv_b_l),
        "o_w": jnp.stack(o_w_l), "o_b": jnp.stack(o_b_l),
        "fc1_w": jnp.stack(fc1_w_l), "fc1_b": jnp.stack(fc1_b_l),
        "fc2_w": jnp.stack(fc2_w_l), "fc2_b": jnp.stack(fc2_b_l),
    })
    return params


# ----------------------------- plain-JAX reference (correctness check) ----------
def _layernorm_ref(x, g, b, eps=EPS):
    mean = jnp.mean(x, axis=-1, keepdims=True)
    var = jnp.mean(jnp.square(x - mean), axis=-1, keepdims=True)
    return (x - mean) * jax.lax.rsqrt(var + eps) * g + b


def clip_forward_ref(params, x):
    B = x.shape[0]
    patches = patchify(x)
    emb = jnp.einsum("bpk,kh->bph", patches, params["patch_w"])
    cls = jnp.broadcast_to(params["cls"][None, None, :], (B, 1, HIDDEN))
    h = jnp.concatenate([cls, emb], axis=1) + params["pos"][None]
    gln = params["gln"]
    h = _layernorm_ref(h, gln[0], gln[1])
    scale = HEAD_DIM ** -0.5
    for l in range(LAYERS):
        ln = params["ln"][l]
        hn = _layernorm_ref(h, ln[0], ln[1])
        qkv = jnp.einsum("bsh,hf->bsf", hn,
                         params["qkv_w"][l][:, :3 * HIDDEN]) + params["qkv_b"][l][0, :3 * HIDDEN]
        q, k, v = jnp.split(qkv, 3, axis=-1)

        def split_heads(t):
            return t.reshape(B, SEQ, HEADS, HEAD_DIM).transpose(0, 2, 1, 3)

        qh, kh, vh = split_heads(q) * scale, split_heads(k), split_heads(v)
        s = jnp.einsum("bhqd,bhkd->bhqk", qh, kh)
        p = jax.nn.softmax(s, axis=-1)
        o = jnp.einsum("bhqk,bhkd->bhqd", p, vh).transpose(0, 2, 1, 3).reshape(B, SEQ, HIDDEN)
        o = jnp.einsum("bsh,hf->bsf", o, params["o_w"][l]) + params["o_b"][l][0]
        h = h + o
        hn = _layernorm_ref(h, ln[2], ln[3])
        t = jnp.einsum("bsh,hm->bsm", hn, params["fc1_w"][l][:, :MLP]) + params["fc1_b"][l][0, :MLP]
        t = t * jax.nn.sigmoid(1.702 * t)
        t = jnp.einsum("bsm,mh->bsh", t, params["fc2_w"][l][:MLP, :]) + params["fc2_b"][l][0]
        h = h + t
    return _layernorm_ref(h[:, 0, :], gln[2], gln[3])


# ----------------------------- main ----------------------------------------------
if __name__ == "__main__":
    key = jax.random.PRNGKey(0)
    pkey, xkey = jax.random.split(key)
    params = init_params(pkey)
    x = jax.random.normal(xkey, (BATCH, CHANNELS, IMAGE, IMAGE), dtype=DTYPE)

    out = jax.block_until_ready(jax.jit(clip_forward)(params, x))
    assert out.shape == (BATCH, HIDDEN) and out.dtype == DTYPE
    assert bool(jnp.all(jnp.isfinite(out)))

    ref = jax.jit(clip_forward_ref)(params, x)
    assert bool(jnp.allclose(out, ref, rtol=1e-4, atol=1e-4)), float(
        jnp.max(jnp.abs(out - ref)))

    print("KERNEL_OK")
</pallas_src>

<mosaic_0001>
module attributes {stable_mosaic.version = 11 : i64} {
  func.func @_clip_fused_kernel(%arg0: i32, %arg1: i32, %arg2: memref<1x8x192xf32, #tpu.memory_space<vmem>>, %arg3: memref<192x32xf32, #tpu.memory_space<vmem>>, %arg4: memref<1x8x32xf32, #tpu.memory_space<vmem>>, %arg5: memref<4x32xf32, #tpu.memory_space<vmem>>, %arg6: memref<1x4x32xf32, #tpu.memory_space<vmem>>, %arg7: memref<1x32x128xf32, #tpu.memory_space<vmem>>, %arg8: memref<1x1x128xf32, #tpu.memory_space<vmem>>, %arg9: memref<1x32x32xf32, #tpu.memory_space<vmem>>, %arg10: memref<1x1x32xf32, #tpu.memory_space<vmem>>, %arg11: memref<1x32x128xf32, #tpu.memory_space<vmem>>, %arg12: memref<1x1x128xf32, #tpu.memory_space<vmem>>, %arg13: memref<1x128x32xf32, #tpu.memory_space<vmem>>, %arg14: memref<1x1x32xf32, #tpu.memory_space<vmem>>, %arg15: memref<1x8x32xf32, #tpu.memory_space<vmem>>, %arg16: memref<8x32xf32, #tpu.memory_space<vmem>>) attributes {dimension_semantics = [#tpu.dimension_semantics<parallel>, #tpu.dimension_semantics<arbitrary>], iteration_bounds = array<i64: 2, 2>, scalar_prefetch = 0 : i64, scratch_operands = 1 : i64, tpu.core_type = #tpu.core_type<tc>, window_params = [{transform_indices = @transform_0, window_bounds = array<i64: 1, 8, 192>}, {pipeline_mode = #tpu.pipeline_mode<synchronous>, transform_indices = @transform_1, window_bounds = array<i64: 192, 32>}, {transform_indices = @transform_2, window_bounds = array<i64: 1, 8, 32>}, {pipeline_mode = #tpu.pipeline_mode<synchronous>, transform_indices = @transform_3, window_bounds = array<i64: 4, 32>}, {transform_indices = @transform_4, window_bounds = array<i64: 1, 4, 32>}, {transform_indices = @transform_5, window_bounds = array<i64: 1, 32, 128>}, {transform_indices = @transform_6, window_bounds = array<i64: 1, 1, 128>}, {transform_indices = @transform_7, window_bounds = array<i64: 1, 32, 32>}, {transform_indices = @transform_8, window_bounds = array<i64: 1, 1, 32>}, {transform_indices = @transform_9, window_bounds = array<i64: 1, 32, 128>}, {transform_indices = @transform_10, window_bounds = array<i64: 1, 1, 128>}, {transform_indices = @transform_11, window_bounds = array<i64: 1, 128, 32>}, {transform_indices = @transform_12, window_bounds = array<i64: 1, 1, 32>}, {transform_indices = @transform_13, window_bounds = array<i64: 1, 8, 32>}]} {
    %c0 = arith.constant 0 : index
    %c0_0 = arith.constant 0 : index
    %0 = vector.load %arg5[%c0, %c0_0] : memref<4x32xf32, #tpu.memory_space<vmem>>, vector<4x32xf32>
    %c0_1 = arith.constant 0 : index
    %c0_2 = arith.constant 0 : index
    %c0_3 = arith.constant 0 : index
    %1 = vector.load %arg6[%c0_1, %c0_2, %c0_3] : memref<1x4x32xf32, #tpu.memory_space<vmem>>, vector<1x4x32xf32>
    %2 = vector.shape_cast %1 : vector<1x4x32xf32> to vector<4x32xf32>
    %c0_i32 = arith.constant 0 : i32
    %3 = arith.cmpi eq, %arg1, %c0_i32 : i32
    %4 = arith.extui %3 : i1 to i32
    %c0_i32_4 = arith.constant 0 : i32
    %5 = arith.cmpi ne, %4, %c0_i32_4 : i32
    scf.if %5 {
      %c0_73 = arith.constant 0 : index
      %c0_74 = arith.constant 0 : index
      %c0_75 = arith.constant 0 : index
      %173 = vector.load %arg2[%c0_73, %c0_74, %c0_75] : memref<1x8x192xf32, #tpu.memory_space<vmem>>, vector<1x8x192xf32>
      %174 = vector.shape_cast %173 : vector<1x8x192xf32> to vector<8x192xf32>
      %c0_76 = arith.constant 0 : index
      %c0_77 = arith.constant 0 : index
      %175 = vector.load %arg3[%c0_76, %c0_77] : memref<192x32xf32, #tpu.memory_space<vmem>>, vector<192x32xf32>
      %cst_78 = arith.constant dense<0.000000e+00> : vector<8x32xf32>
      %176 = tpu.matmul %174, %175, %cst_78 {dimension_numbers = #tpu.dot_dimension_numbers<[1], [0], [0], [1], [0, 0, 1, 1], [], []>} : vector<8x192xf32>, vector<192x32xf32>, vector<8x32xf32> -> vector<8x32xf32>
      %c0_79 = arith.constant 0 : index
      %c0_80 = arith.constant 0 : index
      %c0_81 = arith.constant 0 : index
      %177 = vector.load %arg4[%c0_79, %c0_80, %c0_81] : memref<1x8x32xf32, #tpu.memory_space<vmem>>, vector<1x8x32xf32>
      %178 = vector.shape_cast %177 : vector<1x8x32xf32> to vector<8x32xf32>
      %179 = arith.addf %176, %178 : vector<8x32xf32>
      %180 = vector.extract_strided_slice %0 {offsets = [0, 0], sizes = [1, 32], strides = [1, 1]} : vector<4x32xf32> to vector<1x32xf32>
      %181 = vector.extract_strided_slice %0 {offsets = [1, 0], sizes = [1, 32], strides = [1, 1]} : vector<4x32xf32> to vector<1x32xf32>
      %cst_82 = arith.constant dense<0.000000e+00> : vector<8xf32>
      %182 = vector.multi_reduction <add>, %179, %cst_82 [1] : vector<8x32xf32> to vector<8xf32>
      %183 = vector.shape_cast %182 : vector<8xf32> to vector<8x1xf32>
      %cst_83 = arith.constant 3.200000e+01 : f32
      %184 = vector.broadcast %cst_83 : f32 to vector<8x1xf32>
      %185 = arith.divf %183, %184 : vector<8x1xf32>
      %186 = vector.broadcast %185 : vector<8x1xf32> to vector<8x32xf32>
      %187 = arith.subf %179, %186 : vector<8x32xf32>
      %188 = arith.mulf %187, %187 : vector<8x32xf32>
      %cst_84 = arith.constant dense<0.000000e+00> : vector<8xf32>
      %189 = vector.multi_reduction <add>, %188, %cst_84 [1] : vector<8x32xf32> to vector<8xf32>
      %190 = vector.shape_cast %189 : vector<8xf32> to vector<8x1xf32>
      %cst_85 = arith.constant 3.200000e+01 : f32
      %191 = vector.broadcast %cst_85 : f32 to vector<8x1xf32>
      %192 = arith.divf %190, %191 : vector<8x1xf32>
      %193 = vector.broadcast %185 : vector<8x1xf32> to vector<8x32xf32>
      %194 = arith.subf %179, %193 : vector<8x32xf32>
      %cst_86 = arith.constant 9.99999974E-6 : f32
      %195 = vector.broadcast %cst_86 : f32 to vector<8x1xf32>
      %196 = arith.addf %192, %195 : vector<8x1xf32>
      %197 = math.rsqrt %196 : vector<8x1xf32>
      %198 = vector.broadcast %197 : vector<8x1xf32> to vector<8x32xf32>
      %199 = arith.mulf %194, %198 : vector<8x32xf32>
      %200 = vector.broadcast %180 : vector<1x32xf32> to vector<8x32xf32>
      %201 = arith.mulf %199, %200 : vector<8x32xf32>
      %202 = vector.broadcast %181 : vector<1x32xf32> to vector<8x32xf32>
      %203 = arith.addf %201, %202 : vector<8x32xf32>
      %c0_87 = arith.constant 0 : index
      %c0_88 = arith.constant 0 : index
      %204 = vector.load %arg16[%c0_87, %c0_88] : memref<8x32xf32, #tpu.memory_space<vmem>>, vector<8x32xf32>
      tpu.vector_store %arg16[%c0_87, %c0_88], %203 {strides = array<i32>} : memref<8x32xf32, #tpu.memory_space<vmem>>, vector<8x32xf32>,
    } else {
    }
    %c0_5 = arith.constant 0 : index
    %c0_6 = arith.constant 0 : index
    %6 = vector.load %arg16[%c0_5, %c0_6] : memref<8x32xf32, #tpu.memory_space<vmem>>, vector<8x32xf32>
    %7 = vector.extract_strided_slice %2 {offsets = [0, 0], sizes = [1, 32], strides = [1, 1]} : vector<4x32xf32> to vector<1x32xf32>
    %8 = vector.extract_strided_slice %2 {offsets = [1, 0], sizes = [1, 32], strides = [1, 1]} : vector<4x32xf32> to vector<1x32xf32>
    %cst = arith.constant dense<0.000000e+00> : vector<8xf32>
    %9 = vector.multi_reduction <add>, %6, %cst [1] : vector<8x32xf32> to vector<8xf32>
    %10 = vector.shape_cast %9 : vector<8xf32> to vector<8x1xf32>
    %cst_7 = arith.constant 3.200000e+01 : f32
    %11 = vector.broadcast %cst_7 : f32 to vector<8x1xf32>
    %12 = arith.divf %10, %11 : vector<8x1xf32>
    %13 = vector.broadcast %12 : vector<8x1xf32> to vector<8x32xf32>
    %14 = arith.subf %6, %13 : vector<8x32xf32>
    %15 = arith.mulf %14, %14 : vector<8x32xf32>
    %cst_8 = arith.constant dense<0.000000e+00> : vector<8xf32>
    %16 = vector.multi_reduction <add>, %15, %cst_8 [1] : vector<8x32xf32> to vector<8xf32>
    %17 = vector.shape_cast %16 : vector<8xf32> to vector<8x1xf32>
    %cst_9 = arith.constant 3.200000e+01 : f32
    %18 = vector.broadcast %cst_9 : f32 to vector<8x1xf32>
    %19 = arith.divf %17, %18 : vector<8x1xf32>
    %20 = vector.broadcast %12 : vector<8x1xf32> to vector<8x32xf32>
    %21 = arith.subf %6, %20 : vector<8x32xf32>
    %cst_10 = arith.constant 9.99999974E-6 : f32
    %22 = vector.broadcast %cst_10 : f32 to vector<8x1xf32>
    %23 = arith.addf %19, %22 : vector<8x1xf32>
    %24 = math.rsqrt %23 : vector<8x1xf32>
    %25 = vector.broadcast %24 : vector<8x1xf32> to vector<8x32xf32>
    %26 = arith.mulf %21, %25 : vector<8x32xf32>
    %27 = vector.broadcast %7 : vector<1x32xf32> to vector<8x32xf32>
    %28 = arith.mulf %26, %27 : vector<8x32xf32>
    %29 = vector.broadcast %8 : vector<1x32xf32> to vector<8x32xf32>
    %30 = arith.addf %28, %29 : vector<8x32xf32>
    %c0_11 = arith.constant 0 : index
    %c0_12 = arith.constant 0 : index
    %c0_13 = arith.constant 0 : index
    %31 = vector.load %arg7[%c0_11, %c0_12, %c0_13] : memref<1x32x128xf32, #tpu.memory_space<vmem>>, vector<1x32x128xf32>
    %32 = vector.shape_cast %31 : vector<1x32x128xf32> to vector<32x128xf32>
    %cst_14 = arith.constant dense<0.000000e+00> : vector<8x128xf32>
    %33 = tpu.matmul %30, %32, %cst_14 {dimension_numbers = #tpu.dot_dimension_numbers<[1], [0], [0], [1], [0, 0, 1, 1], [], []>} : vector<8x32xf32>, vector<32x128xf32>, vector<8x128xf32> -> vector<8x128xf32>
    %c0_15 = arith.constant 0 : index
    %c0_16 = arith.constant 0 : index
    %c0_17 = arith.constant 0 : index
    %34 = vector.load %arg8[%c0_15, %c0_16, %c0_17] : memref<1x1x128xf32, #tpu.memory_space<vmem>>, vector<1x1x128xf32>
    %35 = vector.shape_cast %34 : vector<1x1x128xf32> to vector<1x128xf32>
    %36 = vector.broadcast %35 : vector<1x128xf32> to vector<8x128xf32>
    %37 = arith.addf %33, %36 : vector<8x128xf32>
    %38 = tpu.iota {dimensions = array<i32: 1>} : vector<8x8xi32>
    %c5_i32 = arith.constant 5 : i32
    %39 = vector.broadcast %c5_i32 : i32 to vector<8x8xi32>
    %40 = arith.cmpi slt, %38, %39 : vector<8x8xi32>
    %41 = vector.extract_strided_slice %37 {offsets = [0, 0], sizes = [8, 8], strides = [1, 1]} : vector<8x128xf32> to vector<8x8xf32>
    %cst_18 = arith.constant 0.353553385 : f32
    %42 = vector.broadcast %cst_18 : f32 to vector<8x8xf32>
    %43 = arith.mulf %41, %42 : vector<8x8xf32>
    %44 = vector.extract_strided_slice %37 {offsets = [0, 32], sizes = [8, 8], strides = [1, 1]} : vector<8x128xf32> to vector<8x8xf32>
    %45 = vector.extract_strided_slice %37 {offsets = [0, 64], sizes = [8, 8], strides = [1, 1]} : vector<8x128xf32> to vector<8x8xf32>
    %cst_19 = arith.constant dense<0.000000e+00> : vector<8x8xf32>
    %46 = tpu.matmul %43, %44, %cst_19 {dimension_numbers = #tpu.dot_dimension_numbers<[1], [1], [0], [0], [0, 0, 1, 0], [], []>} : vector<8x8xf32>, vector<8x8xf32>, vector<8x8xf32> -> vector<8x8xf32>
    %cst_20 = arith.constant -1.000000e+09 : f32
    %47 = vector.broadcast %cst_20 : f32 to vector<8x8xf32>
    %48 = arith.select %40, %46, %47 : vector<8x8xi1>, vector<8x8xf32>
    %cst_21 = arith.constant dense<0xFF800000> : vector<8xf32>
    %49 = vector.multi_reduction <maximumf>, %48, %cst_21 [1] : vector<8x8xf32> to vector<8xf32>
    %50 = vector.shape_cast %49 : vector<8xf32> to vector<8x1xf32>
    %51 = vector.broadcast %50 : vector<8x1xf32> to vector<8x8xf32>
    %52 = arith.subf %48, %51 : vector<8x8xf32>
    %53 = math.exp %52 : vector<8x8xf32>
    %cst_22 = arith.constant dense<0.000000e+00> : vector<8xf32>
    %54 = vector.multi_reduction <add>, %53, %cst_22 [1] : vector<8x8xf32> to vector<8xf32>
    %55 = vector.shape_cast %54 : vector<8xf32> to vector<8x1xf32>
    %56 = vector.broadcast %55 : vector<8x1xf32> to vector<8x8xf32>
    %57 = arith.divf %53, %56 : vector<8x8xf32>
    %cst_23 = arith.constant dense<0.000000e+00> : vector<8x8xf32>
    %58 = tpu.matmul %57, %45, %cst_23 {dimension_numbers = #tpu.dot_dimension_numbers<[1], [0], [0], [1], [0, 0, 1, 1], [], []>} : vector<8x8xf32>, vector<8x8xf32>, vector<8x8xf32> -> vector<8x8xf32>
    %59 = vector.extract_strided_slice %37 {offsets = [0, 8], sizes = [8, 8], strides = [1, 1]} : vector<8x128xf32> to vector<8x8xf32>
    %cst_24 = arith.constant 0.353553385 : f32
    %60 = vector.broadcast %cst_24 : f32 to vector<8x8xf32>
    %61 = arith.mulf %59, %60 : vector<8x8xf32>
    %62 = vector.extract_strided_slice %37 {offsets = [0, 40], sizes = [8, 8], strides = [1, 1]} : vector<8x128xf32> to vector<8x8xf32>
    %63 = vector.extract_strided_slice %37 {offsets = [0, 72], sizes = [8, 8], strides = [1, 1]} : vector<8x128xf32> to vector<8x8xf32>
    %cst_25 = arith.constant dense<0.000000e+00> : vector<8x8xf32>
    %64 = tpu.matmul %61, %62, %cst_25 {dimension_numbers = #tpu.dot_dimension_numbers<[1], [1], [0], [0], [0, 0, 1, 0], [], []>} : vector<8x8xf32>, vector<8x8xf32>, vector<8x8xf32> -> vector<8x8xf32>
    %cst_26 = arith.constant -1.000000e+09 : f32
    %65 = vector.broadcast %cst_26 : f32 to vector<8x8xf32>
    %66 = arith.select %40, %64, %65 : vector<8x8xi1>, vector<8x8xf32>
    %cst_27 = arith.constant dense<0xFF800000> : vector<8xf32>
    %67 = vector.multi_reduction <maximumf>, %66, %cst_27 [1] : vector<8x8xf32> to vector<8xf32>
    %68 = vector.shape_cast %67 : vector<8xf32> to vector<8x1xf32>
    %69 = vector.broadcast %68 : vector<8x1xf32> to vector<8x8xf32>
    %70 = arith.subf %66, %69 : vector<8x8xf32>
    %71 = math.exp %70 : vector<8x8xf32>
    %cst_28 = arith.constant dense<0.000000e+00> : vector<8xf32>
    %72 = vector.multi_reduction <add>, %71, %cst_28 [1] : vector<8x8xf32> to vector<8xf32>
    %73 = vector.shape_cast %72 : vector<8xf32> to vector<8x1xf32>
    %74 = vector.broadcast %73 : vector<8x1xf32> to vector<8x8xf32>
    %75 = arith.divf %71, %74 : vector<8x8xf32>
    %cst_29 = arith.constant dense<0.000000e+00> : vector<8x8xf32>
    %76 = tpu.matmul %75, %63, %cst_29 {dimension_numbers = #tpu.dot_dimension_numbers<[1], [0], [0], [1], [0, 0, 1, 1], [], []>} : vector<8x8xf32>, vector<8x8xf32>, vector<8x8xf32> -> vector<8x8xf32>
    %77 = vector.extract_strided_slice %37 {offsets = [0, 16], sizes = [8, 8], strides = [1, 1]} : vector<8x128xf32> to vector<8x8xf32>
    %cst_30 = arith.constant 0.353553385 : f32
    %78 = vector.broadcast %cst_30 : f32 to vector<8x8xf32>
    %79 = arith.mulf %77, %78 : vector<8x8xf32>
    %80 = vector.extract_strided_slice %37 {offsets = [0, 48], sizes = [8, 8], strides = [1, 1]} : vector<8x128xf32> to vector<8x8xf32>
    %81 = vector.extract_strided_slice %37 {offsets = [0, 80], sizes = [8, 8], strides = [1, 1]} : vector<8x128xf32> to vector<8x8xf32>
    %cst_31 = arith.constant dense<0.000000e+00> : vector<8x8xf32>
    %82 = tpu.matmul %79, %80, %cst_31 {dimension_numbers = #tpu.dot_dimension_numbers<[1], [1], [0], [0], [0, 0, 1, 0], [], []>} : vector<8x8xf32>, vector<8x8xf32>, vector<8x8xf32> -> vector<8x8xf32>
    %cst_32 = arith.constant -1.000000e+09 : f32
    %83 = vector.broadcast %cst_32 : f32 to vector<8x8xf32>
    %84 = arith.select %40, %82, %83 : vector<8x8xi1>, vector<8x8xf32>
    %cst_33 = arith.constant dense<0xFF800000> : vector<8xf32>
    %85 = vector.multi_reduction <maximumf>, %84, %cst_33 [1] : vector<8x8xf32> to vector<8xf32>
    %86 = vector.shape_cast %85 : vector<8xf32> to vector<8x1xf32>
    %87 = vector.broadcast %86 : vector<8x1xf32> to vector<8x8xf32>
    %88 = arith.subf %84, %87 : vector<8x8xf32>
    %89 = math.exp %88 : vector<8x8xf32>
    %cst_34 = arith.constant dense<0.000000e+00> : vector<8xf32>
    %90 = vector.multi_reduction <add>, %89, %cst_34 [1] : vector<8x8xf32> to vector<8xf32>
    %91 = vector.shape_cast %90 : vector<8xf32> to vector<8x1xf32>
    %92 = vector.broadcast %91 : vector<8x1xf32> to vector<8x8xf32>
    %93 = arith.divf %89, %92 : vector<8x8xf32>
    %cst_35 = arith.constant dense<0.000000e+00> : vector<8x8xf32>
    %94 = tpu.matmul %93, %81, %cst_35 {dimension_numbers = #tpu.dot_dimension_numbers<[1], [0], [0], [1], [0, 0, 1, 1], [], []>} : vector<8x8xf32>, vector<8x8xf32>, vector<8x8xf32> -> vector<8x8xf32>
    %95 = vector.extract_strided_slice %37 {offsets = [0, 24], sizes = [8, 8], strides = [1, 1]} : vector<8x128xf32> to vector<8x8xf32>
    %cst_36 = arith.constant 0.353553385 : f32
    %96 = vector.broadcast %cst_36 : f32 to vector<8x8xf32>
    %97 = arith.mulf %95, %96 : vector<8x8xf32>
    %98 = vector.extract_strided_slice %37 {offsets = [0, 56], sizes = [8, 8], strides = [1, 1]} : vector<8x128xf32> to vector<8x8xf32>
    %99 = vector.extract_strided_slice %37 {offsets = [0, 88], sizes = [8, 8], strides = [1, 1]} : vector<8x128xf32> to vector<8x8xf32>
    %cst_37 = arith.constant dense<0.000000e+00> : vector<8x8xf32>
    %100 = tpu.matmul %97, %98, %cst_37 {dimension_numbers = #tpu.dot_dimension_numbers<[1], [1], [0], [0], [0, 0, 1, 0], [], []>} : vector<8x8xf32>, vector<8x8xf32>, vector<8x8xf32> -> vector<8x8xf32>
    %cst_38 = arith.constant -1.000000e+09 : f32
    %101 = vector.broadcast %cst_38 : f32 to vector<8x8xf32>
    %102 = arith.select %40, %100, %101 : vector<8x8xi1>, vector<8x8xf32>
    %cst_39 = arith.constant dense<0xFF800000> : vector<8xf32>
    %103 = vector.multi_reduction <maximumf>, %102, %cst_39 [1] : vector<8x8xf32> to vector<8xf32>
    %104 = vector.shape_cast %103 : vector<8xf32> to vector<8x1xf32>
    %105 = vector.broadcast %104 : vector<8x1xf32> to vector<8x8xf32>
    %106 = arith.subf %102, %105 : vector<8x8xf32>
    %107 = math.exp %106 : vector<8x8xf32>
    %cst_40 = arith.constant dense<0.000000e+00> : vector<8xf32>
    %108 = vector.multi_reduction <add>, %107, %cst_40 [1] : vector<8x8xf32> to vector<8xf32>
    %109 = vector.shape_cast %108 : vector<8xf32> to vector<8x1xf32>
    %110 = vector.broadcast %109 : vector<8x1xf32> to vector<8x8xf32>
    %111 = arith.divf %107, %110 : vector<8x8xf32>
    %cst_41 = arith.constant dense<0.000000e+00> : vector<8x8xf32>
    %112 = tpu.matmul %111, %99, %cst_41 {dimension_numbers = #tpu.dot_dimension_numbers<[1], [0], [0], [1], [0, 0, 1, 1], [], []>} : vector<8x8xf32>, vector<8x8xf32>, vector<8x8xf32> -> vector<8x8xf32>
    %113 = tpu.concatenate %58, %76, %94, %112 in 1 : vector<8x8xf32>, vector<8x8xf32>, vector<8x8xf32>, vector<8x8xf32> -> vector<8x32xf32>
    %c0_42 = arith.constant 0 : index
    %c0_43 = arith.constant 0 : index
    %c0_44 = arith.constant 0 : index
    %114 = vector.load %arg9[%c0_42, %c0_43, %c0_44] : memref<1x32x32xf32, #tpu.memory_space<vmem>>, vector<1x32x32xf32>
    %115 = vector.shape_cast %114 : vector<1x32x32xf32> to vector<32x32xf32>
    %cst_45 = arith.constant dense<0.000000e+00> : vector<8x32xf32>
    %116 = tpu.matmul %113, %115, %cst_45 {dimension_numbers = #tpu.dot_dimension_numbers<[1], [0], [0], [1], [0, 0, 1, 1], [], []>} : vector<8x32xf32>, vector<32x32xf32>, vector<8x32xf32> -> vector<8x32xf32>
    %c0_46 = arith.constant 0 : index
    %c0_47 = arith.constant 0 : index
    %c0_48 = arith.constant 0 : index
    %117 = vector.load %arg10[%c0_46, %c0_47, %c0_48] : memref<1x1x32xf32, #tpu.memory_space<vmem>>, vector<1x1x32xf32>
    %118 = vector.shape_cast %117 : vector<1x1x32xf32> to vector<1x32xf32>
    %119 = vector.broadcast %118 : vector<1x32xf32> to vector<8x32xf32>
    %120 = arith.addf %116, %119 : vector<8x32xf32>
    %121 = arith.addf %6, %120 : vector<8x32xf32>
    %122 = vector.extract_strided_slice %2 {offsets = [2, 0], sizes = [1, 32], strides = [1, 1]} : vector<4x32xf32> to vector<1x32xf32>
    %123 = vector.extract_strided_slice %2 {offsets = [3, 0], sizes = [1, 32], strides = [1, 1]} : vector<4x32xf32> to vector<1x32xf32>
    %cst_49 = arith.constant dense<0.000000e+00> : vector<8xf32>
    %124 = vector.multi_reduction <add>, %121, %cst_49 [1] : vector<8x32xf32> to vector<8xf32>
    %125 = vector.shape_cast %124 : vector<8xf32> to vector<8x1xf32>
    %cst_50 = arith.constant 3.200000e+01 : f32
    %126 = vector.broadcast %cst_50 : f32 to vector<8x1xf32>
    %127 = arith.divf %125, %126 : vector<8x1xf32>
    %128 = vector.broadcast %127 : vector<8x1xf32> to vector<8x32xf32>
    %129 = arith.subf %121, %128 : vector<8x32xf32>
    %130 = arith.mulf %129, %129 : vector<8x32xf32>
    %cst_51 = arith.constant dense<0.000000e+00> : vector<8xf32>
    %131 = vector.multi_reduction <add>, %130, %cst_51 [1] : vector<8x32xf32> to vector<8xf32>
    %132 = vector.shape_cast %131 : vector<8xf32> to vector<8x1xf32>
    %cst_52 = arith.constant 3.200000e+01 : f32
    %133 = vector.broadcast %cst_52 : f32 to vector<8x1xf32>
    %134 = arith.divf %132, %133 : vector<8x1xf32>
    %135 = vector.broadcast %127 : vector<8x1xf32> to vector<8x32xf32>
    %136 = arith.subf %121, %135 : vector<8x32xf32>
    %cst_53 = arith.constant 9.99999974E-6 : f32
    %137 = vector.broadcast %cst_53 : f32 to vector<8x1xf32>
    %138 = arith.addf %134, %137 : vector<8x1xf32>
    %139 = math.rsqrt %138 : vector<8x1xf32>
    %140 = vector.broadcast %139 : vector<8x1xf32> to vector<8x32xf32>
    %141 = arith.mulf %136, %140 : vector<8x32xf32>
    %142 = vector.broadcast %122 : vector<1x32xf32> to vector<8x32xf32>
    %143 = arith.mulf %141, %142 : vector<8x32xf32>
    %144 = vector.broadcast %123 : vector<1x32xf32> to vector<8x32xf32>
    %145 = arith.addf %143, %144 : vector<8x32xf32>
    %c0_54 = arith.constant 0 : index
    %c0_55 = arith.constant 0 : index
    %c0_56 = arith.constant 0 : index
    %146 = vector.load %arg11[%c0_54, %c0_55, %c0_56] : memref<1x32x128xf32, #tpu.memory_space<vmem>>, vector<1x32x128xf32>
    %147 = vector.shape_cast %146 : vector<1x32x128xf32> to vector<32x128xf32>
    %cst_57 = arith.constant dense<0.000000e+00> : vector<8x128xf32>
    %148 = tpu.matmul %145, %147, %cst_57 {dimension_numbers = #tpu.dot_dimension_numbers<[1], [0], [0], [1], [0, 0, 1, 1], [], []>} : vector<8x32xf32>, vector<32x128xf32>, vector<8x128xf32> -> vector<8x128xf32>
    %c0_58 = arith.constant 0 : index
    %c0_59 = arith.constant 0 : index
    %c0_60 = arith.constant 0 : index
    %149 = vector.load %arg12[%c0_58, %c0_59, %c0_60] : memref<1x1x128xf32, #tpu.memory_space<vmem>>, vector<1x1x128xf32>
    %150 = vector.shape_cast %149 : vector<1x1x128xf32> to vector<1x128xf32>
    %151 = vector.broadcast %150 : vector<1x128xf32> to vector<8x128xf32>
    %152 = arith.addf %148, %151 : vector<8x128xf32>
    %cst_61 = arith.constant 1.702000e+00 : f32
    %153 = vector.broadcast %cst_61 : f32 to vector<8x128xf32>
    %154 = arith.mulf %153, %152 : vector<8x128xf32>
    %155 = arith.negf %154 : vector<8x128xf32>
    %156 = math.exp %155 : vector<8x128xf32>
    %cst_62 = arith.constant 1.000000e+00 : f32
    %157 = vector.broadcast %cst_62 : f32 to vector<8x128xf32>
    %158 = arith.addf %157, %156 : vector<8x128xf32>
    %159 = arith.divf %157, %158 : vector<8x128xf32>
    %160 = arith.mulf %152, %159 : vector<8x128xf32>
    %c0_63 = arith.constant 0 : index
    %c0_64 = arith.constant 0 : index
    %c0_65 = arith.constant 0 : index
    %161 = vector.load %arg13[%c0_63, %c0_64, %c0_65] : memref<1x128x32xf32, #tpu.memory_space<vmem>>, vector<1x128x32xf32>
    %162 = vector.shape_cast %161 : vector<1x128x32xf32> to vector<128x32xf32>
    %cst_66 = arith.constant dense<0.000000e+00> : vector<8x32xf32>
    %163 = tpu.matmul %160, %162, %cst_66 {dimension_numbers = #tpu.dot_dimension_numbers<[1], [0], [0], [1], [0, 0, 1, 1], [], []>} : vector<8x128xf32>, vector<128x32xf32>, vector<8x32xf32> -> vector<8x32xf32>
    %c0_67 = arith.constant 0 : index
    %c0_68 = arith.constant 0 : index
    %c0_69 = arith.constant 0 : index
    %164 = vector.load %arg14[%c0_67, %c0_68, %c0_69] : memref<1x1x32xf32, #tpu.memory_space<vmem>>, vector<1x1x32xf32>
    %165 = vector.shape_cast %164 : vector<1x1x32xf32> to vector<1x32xf32>
    %166 = vector.broadcast %165 : vector<1x32xf32> to vector<8x32xf32>
    %167 = arith.addf %163, %166 : vector<8x32xf32>
    %168 = arith.addf %121, %167 : vector<8x32xf32>
    %c0_70 = arith.constant 0 : index
    %c0_71 = arith.constant 0 : index
    %169 = vector.load %arg16[%c0_70, %c0_71] : memref<8x32xf32, #tpu.memory_space<vmem>>, vector<8x32xf32>
    tpu.vector_store %arg16[%c0_70, %c0_71], %168 {strides = array<i32>} : memref<8x32xf32, #tpu.memory_space<vmem>>, vector<8x32xf32>,
    %c1_i32 = arith.constant 1 : i32
    %170 = arith.cmpi eq, %arg1, %c1_i32 : i32
    %171 = arith.extui %170 : i1 to i32
    %c0_i32_72 = arith.constant 0 : i32
    %172 = arith.cmpi ne, %171, %c0_i32_72 : i32
    scf.if %172 {
      %173 = vector.extract_strided_slice %0 {offsets = [2, 0], sizes = [1, 32], strides = [1, 1]} : vector<4x32xf32> to vector<1x32xf32>
      %174 = vector.extract_strided_slice %0 {offsets = [3, 0], sizes = [1, 32], strides = [1, 1]} : vector<4x32xf32> to vector<1x32xf32>
      %cst_73 = arith.constant dense<0.000000e+00> : vector<8xf32>
      %175 = vector.multi_reduction <add>, %168, %cst_73 [1] : vector<8x32xf32> to vector<8xf32>
      %176 = vector.shape_cast %175 : vector<8xf32> to vector<8x1xf32>
      %cst_74 = arith.constant 3.200000e+01 : f32
      %177 = vector.broadcast %cst_74 : f32 to vector<8x1xf32>
      %178 = arith.divf %176, %177 : vector<8x1xf32>
      %179 = vector.broadcast %178 : vector<8x1xf32> to vector<8x32xf32>
      %180 = arith.subf %168, %179 : vector<8x32xf32>
      %181 = arith.mulf %180, %180 : vector<8x32xf32>
      %cst_75 = arith.constant dense<0.000000e+00> : vector<8xf32>
      %182 = vector.multi_reduction <add>, %181, %cst_75 [1] : vector<8x32xf32> to vector<8xf32>
      %183 = vector.shape_cast %182 : vector<8xf32> to vector<8x1xf32>
      %cst_76 = arith.constant 3.200000e+01 : f32
      %184 = vector.broadcast %cst_76 : f32 to vector<8x1xf32>
      %185 = arith.divf %183, %184 : vector<8x1xf32>
      %186 = vector.broadcast %178 : vector<8x1xf32> to vector<8x32xf32>
      %187 = arith.subf %168, %186 : vector<8x32xf32>
      %cst_77 = arith.constant 9.99999974E-6 : f32
      %188 = vector.broadcast %cst_77 : f32 to vector<8x1xf32>
      %189 = arith.addf %185, %188 : vector<8x1xf32>
      %190 = math.rsqrt %189 : vector<8x1xf32>
      %191 = vector.broadcast %190 : vector<8x1xf32> to vector<8x32xf32>
      %192 = arith.mulf %187, %191 : vector<8x32xf32>
      %193 = vector.broadcast %173 : vector<1x32xf32> to vector<8x32xf32>
      %194 = arith.mulf %192, %193 : vector<8x32xf32>
      %195 = vector.broadcast %174 : vector<1x32xf32> to vector<8x32xf32>
      %196 = arith.addf %194, %195 : vector<8x32xf32>
      %c0_78 = arith.constant 0 : index
      %c0_79 = arith.constant 0 : index
      %c0_80 = arith.constant 0 : index
      %197 = vector.load %arg15[%c0_78, %c0_79, %c0_80] : memref<1x8x32xf32, #tpu.memory_space<vmem>>, vector<1x8x32xf32>
      %198 = vector.shape_cast %197 : vector<1x8x32xf32> to vector<8x32xf32>
      %199 = vector.shape_cast %196 : vector<8x32xf32> to vector<1x8x32xf32>
      tpu.vector_store %arg15[%c0_78, %c0_79, %c0_80], %199 {strides = array<i32>} : memref<1x8x32xf32, #tpu.memory_space<vmem>>, vector<1x8x32xf32>,
    } else {
    }
    return
  }
  func.func @transform_0(%arg0: i32, %arg1: i32) -> (i32, i32, i32) {
    %c0_i32 = arith.constant 0 : i32
    %c0_i32_0 = arith.constant 0 : i32
    %c0_i32_1 = arith.constant 0 : i32
    return %arg0, %c0_i32, %c0_i32_0 : i32, i32, i32
  }
  func.func @transform_1(%arg0: i32, %arg1: i32) -> (i32, i32) {
    %c0_i32 = arith.constant 0 : i32
    %c0_i32_0 = arith.constant 0 : i32
    %c0_i32_1 = arith.constant 0 : i32
    return %c0_i32, %c0_i32_0 : i32, i32
  }
  func.func @transform_2(%arg0: i32, %arg1: i32) -> (i32, i32, i32) {
    %c0_i32 = arith.constant 0 : i32
    %c0_i32_0 = arith.constant 0 : i32
    %c0_i32_1 = arith.constant 0 : i32
    return %arg0, %c0_i32, %c0_i32_0 : i32, i32, i32
  }
  func.func @transform_3(%arg0: i32, %arg1: i32) -> (i32, i32) {
    %c0_i32 = arith.constant 0 : i32
    %c0_i32_0 = arith.constant 0 : i32
    %c0_i32_1 = arith.constant 0 : i32
    return %c0_i32, %c0_i32_0 : i32, i32
  }
  func.func @transform_4(%arg0: i32, %arg1: i32) -> (i32, i32, i32) {
    %c0_i32 = arith.constant 0 : i32
    %c0_i32_0 = arith.constant 0 : i32
    %c0_i32_1 = arith.constant 0 : i32
    return %arg1, %c0_i32, %c0_i32_0 : i32, i32, i32
  }
  func.func @transform_5(%arg0: i32, %arg1: i32) -> (i32, i32, i32) {
    %c0_i32 = arith.constant 0 : i32
    %c0_i32_0 = arith.constant 0 : i32
    %c0_i32_1 = arith.constant 0 : i32
    return %arg1, %c0_i32, %c0_i32_0 : i32, i32, i32
  }
  func.func @transform_6(%arg0: i32, %arg1: i32) -> (i32, i32, i32) {
    %c0_i32 = arith.constant 0 : i32
    %c0_i32_0 = arith.constant 0 : i32
    %c0_i32_1 = arith.constant 0 : i32
    return %arg1, %c0_i32, %c0_i32_0 : i32, i32, i32
  }
  func.func @transform_7(%arg0: i32, %arg1: i32) -> (i32, i32, i32) {
    %c0_i32 = arith.constant 0 : i32
    %c0_i32_0 = arith.constant 0 : i32
    %c0_i32_1 = arith.constant 0 : i32
    return %arg1, %c0_i32, %c0_i32_0 : i32, i32, i32
  }
  func.func @transform_8(%arg0: i32, %arg1: i32) -> (i32, i32, i32) {
    %c0_i32 = arith.constant 0 : i32
    %c0_i32_0 = arith.constant 0 : i32
    %c0_i32_1 = arith.constant 0 : i32
    return %arg1, %c0_i32, %c0_i32_0 : i32, i32, i32
  }
  func.func @transform_9(%arg0: i32, %arg1: i32) -> (i32, i32, i32) {
    %c0_i32 = arith.constant 0 : i32
    %c0_i32_0 = arith.constant 0 : i32
    %c0_i32_1 = arith.constant 0 : i32
    return %arg1, %c0_i32, %c0_i32_0 : i32, i32, i32
  }
  func.func @transform_10(%arg0: i32, %arg1: i32) -> (i32, i32, i32) {
    %c0_i32 = arith.constant 0 : i32
    %c0_i32_0 = arith.constant 0 : i32
    %c0_i32_1 = arith.constant 0 : i32
    return %arg1, %c0_i32, %c0_i32_0 : i32, i32, i32
  }
  func.func @transform_11(%arg0: i32, %arg1: i32) -> (i32, i32, i32) {
    %c0_i32 = arith.constant 0 : i32
    %c0_i32_0 = arith.constant 0 : i32
    %c0_i32_1 = arith.constant 0 : i32
    return %arg1, %c0_i32, %c0_i32_0 : i32, i32, i32
  }
  func.func @transform_12(%arg0: i32, %arg1: i32) -> (i32, i32, i32) {
    %c0_i32 = arith.constant 0 : i32
    %c0_i32_0 = arith.constant 0 : i32
    %c0_i32_1 = arith.constant 0 : i32
    return %arg1, %c0_i32, %c0_i32_0 : i32, i32, i32
  }
  func.func @transform_13(%arg0: i32, %arg1: i32) -> (i32, i32, i32) {
    %c0_i32 = arith.constant 0 : i32
    %c0_i32_0 = arith.constant 0 : i32
    %c0_i32_1 = arith.constant 0 : i32
    return %arg0, %c0_i32, %c0_i32_0 : i32, i32, i32
  }
}

</mosaic_0001>

<llo_original>
// kernel: clip_forward.1
$region0: #{clip_forward.1}
  #allocation0 [shape = 'u32[]', space=smem, size = 0x4, offset = 0x4, fixed_abs, tag = 'smem constant byte address 0x4 - core index']
  #allocation1 [shape = 'u32[144,128]{1,0:T(1,128)}', space=vmem, size = 0x12000, scoped, tag = 'internal scratch']
  #allocation2 [shape = 'f32[8,32]{1,0:T(8,128)}', space=vmem, size = 0x1000, scoped, tag = 'scratch operand']
  %s0 = inlined_call_operand.vmem [shape: f32[2,8,192], index: 0, kind: input, shape index: {}]
  %s1 = inlined_call_operand.vmem [shape: f32[192,32], index: 1, kind: input, shape index: {}]
  %s2 = inlined_call_operand.vmem [shape: f32[2,8,32], index: 2, kind: input, shape index: {}]
  %s3 = inlined_call_operand.vmem [shape: f32[4,32], index: 3, kind: input, shape index: {}]
  %s4 = inlined_call_operand.vmem [shape: f32[2,4,32], index: 4, kind: input, shape index: {}]
  %s5 = inlined_call_operand.vmem [shape: f32[2,32,128], index: 5, kind: input, shape index: {}]
  %s6 = inlined_call_operand.vmem [shape: f32[2,1,128], index: 6, kind: input, shape index: {}]
  %s7 = inlined_call_operand.vmem [shape: f32[2,32,32], index: 7, kind: input, shape index: {}]
  %s8 = inlined_call_operand.vmem [shape: f32[2,1,32], index: 8, kind: input, shape index: {}]
  %s9 = inlined_call_operand.vmem [shape: f32[2,32,128], index: 9, kind: input, shape index: {}]
  %s10 = inlined_call_operand.vmem [shape: f32[2,1,128], index: 10, kind: input, shape index: {}]
  %s11 = inlined_call_operand.vmem [shape: f32[2,128,32], index: 11, kind: input, shape index: {}]
  %s12 = inlined_call_operand.vmem [shape: f32[2,1,32], index: 12, kind: input, shape index: {}]
  %s13 = inlined_call_operand.vmem [shape: f32[2,8,32], index: 13, kind: output, shape index: {}]
  %s14 = sld [smem:[#allocation0]]
  $region93: #{clip_forward.1} parent=0
    _
  %s16 = ssub.s32 1, %s14
  %s17 = scalar_select 0, %s16, %s14
  loop: start=0, step=1, limit=6
  $region2: #{clip_forward.1} parent=0 // loop_pre_header
    _
  $region3: #{clip_forward.1} parent=0 // loop_header
    %s19 = sphi 0, %s23
    %p20 = scmp.ge.s32.totalorder %s19, 6
    %s26 = sphi 0, %s38
    %s27 = sphi 0, %s34
    %s28 = sphi 0, %s26
    %s29 = sphi 0, %s27
    %s30 = sphi 0, %s28
    %s31 = sphi 0, %s29
    %s41 = sphi 0, %s43
    %s44 = sphi 0, %s41
    %s45 = sphi 0, %s44
    %s61 = sphi 0, %s45
    %s65 = sphi 0, %s65
    %s67 = sphi 0, %s65
    %s68 = sphi 0, %s67
    %s82 = sphi 0, %s68
    %s88 = sphi 0, %s90
    %s91 = sphi 0, %s88
    %s92 = sphi 0, %s91
    %s108 = sphi 0, %s92
    %s112 = sphi 0, %s112
    %s114 = sphi 0, %s112
    %s115 = sphi 0, %s114
    %s129 = sphi 0, %s115
    %s135 = sphi 0, %s137
    %s138 = sphi 0, %s135
    %s139 = sphi 0, %s138
    %s155 = sphi 0, %s139
    %s161 = sphi 0, %s163
    %s164 = sphi 0, %s161
    %s165 = sphi 0, %s164
    %s181 = sphi 0, %s165
    %s187 = sphi 0, %s189
    %s190 = sphi 0, %s187
    %s191 = sphi 0, %s190
    %s207 = sphi 0, %s191
    %s213 = sphi 0, %s215
    %s216 = sphi 0, %s213
    %s217 = sphi 0, %s216
    %s233 = sphi 0, %s217
    %s239 = sphi 0, %s241
    %s242 = sphi 0, %s239
    %s243 = sphi 0, %s242
    %s259 = sphi 0, %s243
    %s265 = sphi 0, %s267
    %s268 = sphi 0, %s265
    %s269 = sphi 0, %s268
    %s285 = sphi 0, %s269
    %s291 = sphi 0, %s293
    %s294 = sphi 0, %s291
    %s295 = sphi 0, %s294
    %s311 = sphi 0, %s295
    %s317 = sphi 0, %s319
    %s320 = sphi 0, %s317
    %s321 = sphi 0, %s320
    %s337 = sphi 0, %s321
    %s343 = sphi 0, %s345
    %s346 = sphi 0, %s343
    %s347 = sphi 0, %s346
    %s363 = sphi 0, %s347
    %s369 = sphi 0, %s371
    %s372 = sphi 0, %s369
    %s373 = sphi 0, %s372
    %s389 = sphi 0, %s373
  $region4: #{clip_forward.1} parent=0 // loop_header_branch
    %22 = sbr.rel (%p20) target = $region8
  $region5: #{clip_forward.1} parent=0 // loop_body
    %s24 = ssub.s32 %s19, 1
    %s25 = ssub.s32 %s19, 2
    %s32 = sadd.s32 1, %s27
    %p33 = scmp.ge.s32.totalorder %s32, 2
    %s34 = scalar_select %p33, 0, %s32
    %s35 = sadd.s32 1, %s26
    %s36 = scalar_select %p33, %s35, %s26
    %p37 = scmp.ge.s32.totalorder %s36, 2
    %s38 = scalar_select %p37, 0, %s36
    %s39 = ssub.s32 %s26, %s38
    %p40 = scmp.eq.s32.totalorder %s39, 0
    %s42 = sadd.s32 %s41, 1
    %s43 = scalar_select %p40, %s41, %s42
    %p46 = pneg %p40
    %p47 = scmp.eq.s32.totalorder %s19, 3
    %p48 = por %p46, %p47
    %p49 = scmp.ne.s32.totalorder %s41, %s44
    %p50 = scmp.eq.s32.totalorder %s19, 0
    %p51 = por %p49, %p50
    %p52 = scmp.ne.s32.totalorder %s41, %s44
    %p53 = scmp.eq.s32.totalorder %s24, 3
    %p54 = por %p52, %p53
    %p55 = scmp.ne.s32.totalorder %s44, %s45
    %p56 = scmp.eq.s32.totalorder %s24, 0
    %p57 = por %p55, %p56
    %p58 = scmp.ne.s32.totalorder %s44, %s45
    %p59 = scmp.eq.s32.totalorder %s25, 3
    %p60 = por %p58, %p59
    %p62 = scmp.ne.s32.totalorder %s45, %s61
    %p63 = scmp.eq.s32.totalorder %s25, 0
    %p64 = por %p62, %p63
    %s66 = sadd.s32 %s65, 1
    %p69 = scmp.eq.s32.totalorder %s19, 3
    %p70 = scmp.ne.s32.totalorder %s65, %s67
    %p71 = scmp.eq.s32.totalorder %s19, 0
    %p72 = por %p70, %p71
    %p73 = scmp.ne.s32.totalorder %s65, %s67
    %p74 = scmp.eq.s32.totalorder %s24, 3
    %p75 = por %p73, %p74
    %p76 = scmp.ne.s32.totalorder %s67, %s68
    %p77 = scmp.eq.s32.totalorder %s24, 0
    %p78 = por %p76, %p77
    %p79 = scmp.ne.s32.totalorder %s67, %s68
    %p80 = scmp.eq.s32.totalorder %s25, 3
    %p81 = por %p79, %p80
    %p83 = scmp.ne.s32.totalorder %s68, %s82
    %p84 = scmp.eq.s32.totalorder %s25, 0
    %p85 = por %p83, %p84
    %s86 = ssub.s32 %s26, %s38
    %p87 = scmp.eq.s32.totalorder %s86, 0
    %s89 = sadd.s32 %s88, 1
    %s90 = scalar_select %p87, %s88, %s89
    %p93 = pneg %p87
    %p94 = scmp.eq.s32.totalorder %s19, 3
    %p95 = por %p93, %p94
    %p96 = scmp.ne.s32.totalorder %s88, %s91
    %p97 = scmp.eq.s32.totalorder %s19, 0
    %p98 = por %p96, %p97
    %p99 = scmp.ne.s32.totalorder %s88, %s91
    %p100 = scmp.eq.s32.totalorder %s24, 3
    %p101 = por %p99, %p100
    %p102 = scmp.ne.s32.totalorder %s91, %s92
    %p103 = scmp.eq.s32.totalorder %s24, 0
    %p104 = por %p102, %p103
    %p105 = scmp.ne.s32.totalorder %s91, %s92
    %p106 = scmp.eq.s32.totalorder %s25, 3
    %p107 = por %p105, %p106
    %p109 = scmp.ne.s32.totalorder %s92, %s108
    %p110 = scmp.eq.s32.totalorder %s25, 0
    %p111 = por %p109, %p110
    %s113 = sadd.s32 %s112, 1
    %p116 = scmp.eq.s32.totalorder %s19, 3
    %p117 = scmp.ne.s32.totalorder %s112, %s114
    %p118 = scmp.eq.s32.totalorder %s19, 0
    %p119 = por %p117, %p118
    %p120 = scmp.ne.s32.totalorder %s112, %s114
    %p121 = scmp.eq.s32.totalorder %s24, 3
    %p122 = por %p120, %p121
    %p123 = scmp.ne.s32.totalorder %s114, %s115
    %p124 = scmp.eq.s32.totalorder %s24, 0
    %p125 = por %p123, %p124
    %p126 = scmp.ne.s32.totalorder %s114, %s115
    %p127 = scmp.eq.s32.totalorder %s25, 3
    %p128 = por %p126, %p127
    %p130 = scmp.ne.s32.totalorder %s115, %s129
    %p131 = scmp.eq.s32.totalorder %s25, 0
    %p132 = por %p130, %p131
    %s133 = ssub.s32 %s27, %s34
    %p134 = scmp.eq.s32.totalorder %s133, 0
    %s136 = sadd.s32 %s135, 1
    %s137 = scalar_select %p134, %s135, %s136
    %p140 = pneg %p134
    %p141 = scmp.eq.s32.totalorder %s19, 3
    %p142 = por %p140, %p141
    %p143 = scmp.ne.s32.totalorder %s135, %s138
    %p144 = scmp.eq.s32.totalorder %s19, 0
    %p145 = por %p143, %p144
    %p146 = scmp.ne.s32.totalorder %s135, %s138
    %p147 = scmp.eq.s32.totalorder %s24, 3
    %p148 = por %p146, %p147
    %p149 = scmp.ne.s32.totalorder %s138, %s139
    %p150 = scmp.eq.s32.totalorder %s24, 0
    %p151 = por %p149, %p150
    %p152 = scmp.ne.s32.totalorder %s138, %s139
    %p153 = scmp.eq.s32.totalorder %s25, 3
    %p154 = por %p152, %p153
    %p156 = scmp.ne.s32.totalorder %s139, %s155
    %p157 = scmp.eq.s32.totalorder %s25, 0
    %p158 = por %p156, %p157
    %s159 = ssub.s32 %s27, %s34
    %p160 = scmp.eq.s32.totalorder %s159, 0
    %s162 = sadd.s32 %s161, 1
    %s163 = scalar_select %p160, %s161, %s162
    %p166 = pneg %p160
    %p167 = scmp.eq.s32.totalorder %s19, 3
    %p168 = por %p166, %p167
    %p169 = scmp.ne.s32.totalorder %s161, %s164
    %p170 = scmp.eq.s32.totalorder %s19, 0
    %p171 = por %p169, %p170
    %p172 = scmp.ne.s32.totalorder %s161, %s164
    %p173 = scmp.eq.s32.totalorder %s24, 3
    %p174 = por %p172, %p173
    %p175 = scmp.ne.s32.totalorder %s164, %s165
    %p176 = scmp.eq.s32.totalorder %s24, 0
    %p177 = por %p175, %p176
    %p178 = scmp.ne.s32.totalorder %s164, %s165
    %p179 = scmp.eq.s32.totalorder %s25, 3
    %p180 = por %p178, %p179
    %p182 = scmp.ne.s32.totalorder %s165, %s181
    %p183 = scmp.eq.s32.totalorder %s25, 0
    %p184 = por %p182, %p183
    %s185 = ssub.s32 %s27, %s34
    %p186 = scmp.eq.s32.totalorder %s185, 0
    %s188 = sadd.s32 %s187, 1
    %s189 = scalar_select %p186, %s187, %s188
    %p192 = pneg %p186
    %p193 = scmp.eq.s32.totalorder %s19, 3
    %p194 = por %p192, %p193
    %p195 = scmp.ne.s32.totalorder %s187, %s190
    %p196 = scmp.eq.s32.totalorder %s19, 0
    %p197 = por %p195, %p196
    %p198 = scmp.ne.s32.totalorder %s187, %s190
    %p199 = scmp.eq.s32.totalorder %s24, 3
    %p200 = por %p198, %p199
    %p201 = scmp.ne.s32.totalorder %s190, %s191
    %p202 = scmp.eq.s32.totalorder %s24, 0
    %p203 = por %p201, %p202
    %p204 = scmp.ne.s32.totalorder %s190, %s191
    %p205 = scmp.eq.s32.totalorder %s25, 3
    %p206 = por %p204, %p205
    %p208 = scmp.ne.s32.totalorder %s191, %s207
    %p209 = scmp.eq.s32.totalorder %s25, 0
    %p210 = por %p208, %p209
    %s211 = ssub.s32 %s27, %s34
    %p212 = scmp.eq.s32.totalorder %s211, 0
    %s214 = sadd.s32 %s213, 1
    %s215 = scalar_select %p212, %s213, %s214
    %p218 = pneg %p212
    %p219 = scmp.eq.s32.totalorder %s19, 3
    %p220 = por %p218, %p219
    %p221 = scmp.ne.s32.totalorder %s213, %s216
    %p222 = scmp.eq.s32.totalorder %s19, 0
    %p223 = por %p221, %p222
    %p224 = scmp.ne.s32.totalorder %s213, %s216
    %p225 = scmp.eq.s32.totalorder %s24, 3
    %p226 = por %p224, %p225
    %p227 = scmp.ne.s32.totalorder %s216, %s217
    %p228 = scmp.eq.s32.totalorder %s24, 0
    %p229 = por %p227, %p228
    %p230 = scmp.ne.s32.totalorder %s216, %s217
    %p231 = scmp.eq.s32.totalorder %s25, 3
    %p232 = por %p230, %p231
    %p234 = scmp.ne.s32.totalorder %s217, %s233
    %p235 = scmp.eq.s32.totalorder %s25, 0
    %p236 = por %p234, %p235
    %s237 = ssub.s32 %s27, %s34
    %p238 = scmp.eq.s32.totalorder %s237, 0
    %s240 = sadd.s32 %s239, 1
    %s241 = scalar_select %p238, %s239, %s240
    %p244 = pneg %p238
    %p245 = scmp.eq.s32.totalorder %s19, 3
    %p246 = por %p244, %p245
    %p247 = scmp.ne.s32.totalorder %s239, %s242
    %p248 = scmp.eq.s32.totalorder %s19, 0
    %p249 = por %p247, %p248
    %p250 = scmp.ne.s32.totalorder %s239, %s242
    %p251 = scmp.eq.s32.totalorder %s24, 3
    %p252 = por %p250, %p251
    %p253 = scmp.ne.s32.totalorder %s242, %s243
    %p254 = scmp.eq.s32.totalorder %s24, 0
    %p255 = por %p253, %p254
    %p256 = scmp.ne.s32.totalorder %s242, %s243
    %p257 = scmp.eq.s32.totalorder %s25, 3
    %p258 = por %p256, %p257
    %p260 = scmp.ne.s32.totalorder %s243, %s259
    %p261 = scmp.eq.s32.totalorder %s25, 0
    %p262 = por %p260, %p261
    %s263 = ssub.s32 %s27, %s34
    %p264 = scmp.eq.s32.totalorder %s263, 0
    %s266 = sadd.s32 %s265, 1
    %s267 = scalar_select %p264, %s265, %s266
    %p270 = pneg %p264
    %p271 = scmp.eq.s32.totalorder %s19, 3
    %p272 = por %p270, %p271
    %p273 = scmp.ne.s32.totalorder %s265, %s268
    %p274 = scmp.eq.s32.totalorder %s19, 0
    %p275 = por %p273, %p274
    %p276 = scmp.ne.s32.totalorder %s265, %s268
    %p277 = scmp.eq.s32.totalorder %s24, 3
    %p278 = por %p276, %p277
    %p279 = scmp.ne.s32.totalorder %s268, %s269
    %p280 = scmp.eq.s32.totalorder %s24, 0
    %p281 = por %p279, %p280
    %p282 = scmp.ne.s32.totalorder %s268, %s269
    %p283 = scmp.eq.s32.totalorder %s25, 3
    %p284 = por %p282, %p283
    %p286 = scmp.ne.s32.totalorder %s269, %s285
    %p287 = scmp.eq.s32.totalorder %s25, 0
    %p288 = por %p286, %p287
    %s289 = ssub.s32 %s27, %s34
    %p290 = scmp.eq.s32.totalorder %s289, 0
    %s292 = sadd.s32 %s291, 1
    %s293 = scalar_select %p290, %s291, %s292
    %p296 = pneg %p290
    %p297 = scmp.eq.s32.totalorder %s19, 3
    %p298 = por %p296, %p297
    %p299 = scmp.ne.s32.totalorder %s291, %s294
    %p300 = scmp.eq.s32.totalorder %s19, 0
    %p301 = por %p299, %p300
    %p302 = scmp.ne.s32.totalorder %s291, %s294
    %p303 = scmp.eq.s32.totalorder %s24, 3
    %p304 = por %p302, %p303
    %p305 = scmp.ne.s32.totalorder %s294, %s295
    %p306 = scmp.eq.s32.totalorder %s24, 0
    %p307 = por %p305, %p306
    %p308 = scmp.ne.s32.totalorder %s294, %s295
    %p309 = scmp.eq.s32.totalorder %s25, 3
    %p310 = por %p308, %p309
    %p312 = scmp.ne.s32.totalorder %s295, %s311
    %p313 = scmp.eq.s32.totalorder %s25, 0
    %p314 = por %p312, %p313
    %s315 = ssub.s32 %s27, %s34
    %p316 = scmp.eq.s32.totalorder %s315, 0
    %s318 = sadd.s32 %s317, 1
    %s319 = scalar_select %p316, %s317, %s318
    %p322 = pneg %p316
    %p323 = scmp.eq.s32.totalorder %s19, 3
    %p324 = por %p322, %p323
    %p325 = scmp.ne.s32.totalorder %s317, %s320
    %p326 = scmp.eq.s32.totalorder %s19, 0
    %p327 = por %p325, %p326
    %p328 = scmp.ne.s32.totalorder %s317, %s320
    %p329 = scmp.eq.s32.totalorder %s24, 3
    %p330 = por %p328, %p329
    %p331 = scmp.ne.s32.totalorder %s320, %s321
    %p332 = scmp.eq.s32.totalorder %s24, 0
    %p333 = por %p331, %p332
    %p334 = scmp.ne.s32.totalorder %s320, %s321
    %p335 = scmp.eq.s32.totalorder %s25, 3
    %p336 = por %p334, %p335
    %p338 = scmp.ne.s32.totalorder %s321, %s337
    %p339 = scmp.eq.s32.totalorder %s25, 0
    %p340 = por %p338, %p339
    %s341 = ssub.s32 %s27, %s34
    %p342 = scmp.eq.s32.totalorder %s341, 0
    %s344 = sadd.s32 %s343, 1
    %s345 = scalar_select %p342, %s343, %s344
    %p348 = pneg %p342
    %p349 = scmp.eq.s32.totalorder %s19, 3
    %p350 = por %p348, %p349
    %p351 = scmp.ne.s32.totalorder %s343, %s346
    %p352 = scmp.eq.s32.totalorder %s19, 0
    %p353 = por %p351, %p352
    %p354 = scmp.ne.s32.totalorder %s343, %s346
    %p355 = scmp.eq.s32.totalorder %s24, 3
    %p356 = por %p354, %p355
    %p357 = scmp.ne.s32.totalorder %s346, %s347
    %p358 = scmp.eq.s32.totalorder %s24, 0
    %p359 = por %p357, %p358
    %p360 = scmp.ne.s32.totalorder %s346, %s347
    %p361 = scmp.eq.s32.totalorder %s25, 3
    %p362 = por %p360, %p361
    %p364 = scmp.ne.s32.totalorder %s347, %s363
    %p365 = scmp.eq.s32.totalorder %s25, 0
    %p366 = por %p364, %p365
    %s367 = ssub.s32 %s26, %s38
    %p368 = scmp.eq.s32.totalorder %s367, 0
    %s370 = sadd.s32 %s369, 1
    %s371 = scalar_select %p368, %s369, %s370
    %p374 = pneg %p368
    %p375 = scmp.eq.s32.totalorder %s19, 3
    %p376 = por %p374, %p375
    %p377 = scmp.ne.s32.totalorder %s369, %s372
    %p378 = scmp.eq.s32.totalorder %s19, 0
    %p379 = por %p377, %p378
    %p380 = scmp.ne.s32.totalorder %s369, %s372
    %p381 = scmp.eq.s32.totalorder %s24, 3
    %p382 = por %p380, %p381
    %p383 = scmp.ne.s32.totalorder %s372, %s373
    %p384 = scmp.eq.s32.totalorder %s24, 0
    %p385 = por %p383, %p384
    %p386 = scmp.ne.s32.totalorder %s372, %s373
    %p387 = scmp.eq.s32.totalorder %s25, 3
    %p388 = por %p386, %p387
    %p390 = scmp.ne.s32.totalorder %s373, %s389
    %p391 = scmp.eq.s32.totalorder %s25, 0
    %p392 = por %p390, %p391
    %p393 = scmp.le.s32.totalorder 1, %s19
    %p394 = scmp.lt.s32.totalorder %s19, 5
    %p395 = pnand %p393, %p394
    %p396 = pneg %p395
    // Predicated region
    $region9: #{clip_forward.1} parent=5 // pred_check
      _
    $region10: #{clip_forward.1} parent=5 // pred_check_branch
      %398 = sbr.rel (%p395) target = $region12
    $region11: #{clip_forward.1} parent=5 // pred_region
      %s399 = ssub.s32 %s19, 1
      // Predicated region
      $region13: #{clip_forward.1} parent=11 // pred_check
        %p400 = pneg %p78
      $region14: #{clip_forward.1} parent=11 // pred_check_branch
        %402 = sbr.rel (%p400) target = $region16
      $region15: #{clip_forward.1} parent=11 // pred_region
        _
      $region16: #{clip_forward.1} parent=11 // pred_fallthru
        _
      // Predicated region
      $region17: #{clip_forward.1} parent=11 // pred_check
        %p403 = pneg %p125
      $region18: #{clip_forward.1} parent=11 // pred_check_branch
        %405 = sbr.rel (%p403) target = $region20
      $region19: #{clip_forward.1} parent=11 // pred_region
        _
      $region20: #{clip_forward.1} parent=11 // pred_fallthru
        _
    $region12: #{clip_forward.1} parent=5 // pred_fallthru
      _
    %p406 = scmp.lt.s32.totalorder %s19, 4
    // Predicated region
    $region21: #{clip_forward.1} parent=5 // pred_check
      %p407 = pneg %p406
    $region22: #{clip_forward.1} parent=5 // pred_check_branch
      %409 = sbr.rel (%p407) target = $region24
    $region23: #{clip_forward.1} parent=5 // pred_region
      // Predicated region
      $region25: #{clip_forward.1} parent=23 // pred_check
        %p410 = pneg %p51
      $region26: #{clip_forward.1} parent=23 // pred_check_branch
        %412 = sbr.rel (%p410) target = $region28
      $region27: #{clip_forward.1} parent=23 // pred_region
        %p413 = scmp.lt.s32.totalorder %s26, 1
        %s414 = scalar_select %p413, %s26, 1
        %s415 = smul.addr %s414, 2
        %s416 = smul.addr %s415, 8
        %s417 = scalar_lea.vmem %s0, %s416
      $region28: #{clip_forward.1} parent=23 // pred_fallthru
        _
      // Predicated region
      $region29: #{clip_forward.1} parent=23 // pred_check
        %p418 = pneg %p98
      $region30: #{clip_forward.1} parent=23 // pred_check_branch
        %420 = sbr.rel (%p418) target = $region32
      $region31: #{clip_forward.1} parent=23 // pred_region
        %p421 = scmp.lt.s32.totalorder %s26, 1
        %s422 = scalar_select %p421, %s26, 1
        %s423 = smul.addr %s422, 8
        %s424 = scalar_lea.vmem %s2, %s423
      $region32: #{clip_forward.1} parent=23 // pred_fallthru
        _
      // Predicated region
      $region33: #{clip_forward.1} parent=23 // pred_check
        %p425 = pneg %p145
      $region34: #{clip_forward.1} parent=23 // pred_check_branch
        %427 = sbr.rel (%p425) target = $region36
      $region35: #{clip_forward.1} parent=23 // pred_region
        %p428 = scmp.lt.s32.totalorder %s27, 1
        %s429 = scalar_select %p428, %s27, 1
        %s430 = smul.addr %s429, 4
        %s431 = scalar_lea.vmem %s4, %s430
      $region36: #{clip_forward.1} parent=23 // pred_fallthru
        _
      // Predicated region
      $region37: #{clip_forward.1} parent=23 // pred_check
        %p432 = pneg %p171
      $region38: #{clip_forward.1} parent=23 // pred_check_branch
        %434 = sbr.rel (%p432) target = $region40
      $region39: #{clip_forward.1} parent=23 // pred_region
        %p435 = scmp.lt.s32.totalorder %s27, 1
        %s436 = scalar_select %p435, %s27, 1
        %s437 = smul.addr %s436, 4
        %s438 = smul.addr %s437, 8
        %s439 = scalar_lea.vmem %s5, %s438
      $region40: #{clip_forward.1} parent=23 // pred_fallthru
        _
      // Predicated region
      $region41: #{clip_forward.1} parent=23 // pred_check
        %p440 = pneg %p197
      $region42: #{clip_forward.1} parent=23 // pred_check_branch
        %442 = sbr.rel (%p440) target = $region44
      $region43: #{clip_forward.1} parent=23 // pred_region
        %p443 = scmp.lt.s32.totalorder %s27, 1
        %s444 = scalar_select %p443, %s27, 1
        %s445 = scalar_lea.vmem %s6, %s444
      $region44: #{clip_forward.1} parent=23 // pred_fallthru
        _
      // Predicated region
      $region45: #{clip_forward.1} parent=23 // pred_check
        %p446 = pneg %p223
      $region46: #{clip_forward.1} parent=23 // pred_check_branch
        %448 = sbr.rel (%p446) target = $region48
      $region47: #{clip_forward.1} parent=23 // pred_region
        %p449 = scmp.lt.s32.totalorder %s27, 1
        %s450 = scalar_select %p449, %s27, 1
        %s451 = smul.addr %s450, 4
        %s452 = smul.addr %s451, 8
        %s453 = scalar_lea.vmem %s7, %s452
      $region48: #{clip_forward.1} parent=23 // pred_fallthru
        _
      // Predicated region
      $region49: #{clip_forward.1} parent=23 // pred_check
        %p454 = pneg %p249
      $region50: #{clip_forward.1} parent=23 // pred_check_branch
        %456 = sbr.rel (%p454) target = $region52
      $region51: #{clip_forward.1} parent=23 // pred_region
        %p457 = scmp.lt.s32.totalorder %s27, 1
        %s458 = scalar_select %p457, %s27, 1
        %s459 = scalar_lea.vmem %s8, %s458
      $region52: #{clip_forward.1} parent=23 // pred_fallthru
        _
      // Predicated region
      $region53: #{clip_forward.1} parent=23 // pred_check
        %p460 = pneg %p275
      $region54: #{clip_forward.1} parent=23 // pred_check_branch
        %462 = sbr.rel (%p460) target = $region56
      $region55: #{clip_forward.1} parent=23 // pred_region
        %p463 = scmp.lt.s32.totalorder %s27, 1
        %s464 = scalar_select %p463, %s27, 1
        %s465 = smul.addr %s464, 4
        %s466 = smul.addr %s465, 8
        %s467 = scalar_lea.vmem %s9, %s466
      $region56: #{clip_forward.1} parent=23 // pred_fallthru
        _
      // Predicated region
      $region57: #{clip_forward.1} parent=23 // pred_check
        %p468 = pneg %p301
      $region58: #{clip_forward.1} parent=23 // pred_check_branch
        %470 = sbr.rel (%p468) target = $region60
      $region59: #{clip_forward.1} parent=23 // pred_region
        %p471 = scmp.lt.s32.totalorder %s27, 1
        %s472 = scalar_select %p471, %s27, 1
        %s473 = scalar_lea.vmem %s10, %s472
      $region60: #{clip_forward.1} parent=23 // pred_fallthru
        _
      // Predicated region
      $region61: #{clip_forward.1} parent=23 // pred_check
        %p474 = pneg %p327
      $region62: #{clip_forward.1} parent=23 // pred_check_branch
        %476 = sbr.rel (%p474) target = $region64
      $region63: #{clip_forward.1} parent=23 // pred_region
        %p477 = scmp.lt.s32.totalorder %s27, 1
        %s478 = scalar_select %p477, %s27, 1
        %s479 = smul.addr %s478, 16
        %s480 = smul.addr %s479, 8
        %s481 = scalar_lea.vmem %s11, %s480
      $region64: #{clip_forward.1} parent=23 // pred_fallthru
        _
      // Predicated region
      $region65: #{clip_forward.1} parent=23 // pred_check
        %p482 = pneg %p353
      $region66: #{clip_forward.1} parent=23 // pred_check_branch
        %484 = sbr.rel (%p482) target = $region68
      $region67: #{clip_forward.1} parent=23 // pred_region
        %p485 = scmp.lt.s32.totalorder %s27, 1
        %s486 = scalar_select %p485, %s27, 1
        %s487 = scalar_lea.vmem %s12, %s486
      $region68: #{clip_forward.1} parent=23 // pred_fallthru
        _
    $region24: #{clip_forward.1} parent=5 // pred_fallthru
      _
    %p488 = scmp.le.s32.totalorder 1, %s19
    %p489 = scmp.lt.s32.totalorder %s19, 5
    %p490 = pnand %p488, %p489
    %p491 = pneg %p490
    // Predicated region
    $region69: #{clip_forward.1} parent=5 // pred_check
      _
    $region70: #{clip_forward.1} parent=5 // pred_check_branch
      %493 = sbr.rel (%p490) target = $region72
    $region71: #{clip_forward.1} parent=5 // pred_region
      %s494 = ssub.s32 %s19, 1
      %p495 = scmp.lt.s32.totalorder %s28, 1
      %s496 = scalar_select %p495, %s28, 1
      %s497 = smul.addr %s496, 2
      %s498 = smul.addr %s497, 8
      %s499 = scalar_lea.vmem %s0, %s498
      %p500 = pneg %p57
      %p501 = pneg %p54
      %p502 = pneg %p78
      %p503 = pneg %p75
      %p504 = scmp.lt.s32.totalorder %s28, 1
      %s505 = scalar_select %p504, %s28, 1
      %s506 = smul.addr %s505, 8
      %s507 = scalar_lea.vmem %s2, %s506
      %p508 = pneg %p104
      %p509 = pneg %p101
      %p510 = pneg %p125
      %p511 = pneg %p122
      %p512 = scmp.lt.s32.totalorder %s29, 1
      %s513 = scalar_select %p512, %s29, 1
      %s514 = smul.addr %s513, 4
      %s515 = scalar_lea.vmem %s4, %s514
      %p516 = pneg %p151
      %p517 = pneg %p148
      %p518 = scmp.lt.s32.totalorder %s29, 1
      %s519 = scalar_select %p518, %s29, 1
      %s520 = smul.addr %s519, 4
      %s521 = smul.addr %s520, 8
      %s522 = scalar_lea.vmem %s5, %s521
      %p523 = pneg %p177
      %p524 = pneg %p174
      %p525 = scmp.lt.s32.totalorder %s29, 1
      %s526 = scalar_select %p525, %s29, 1
      %s527 = scalar_lea.vmem %s6, %s526
      %p528 = pneg %p203
      %p529 = pneg %p200
      %p530 = scmp.lt.s32.totalorder %s29, 1
      %s531 = scalar_select %p530, %s29, 1
      %s532 = smul.addr %s531, 4
      %s533 = smul.addr %s532, 8
      %s534 = scalar_lea.vmem %s7, %s533
      %p535 = pneg %p229
      %p536 = pneg %p226
      %p537 = scmp.lt.s32.totalorder %s29, 1
      %s538 = scalar_select %p537, %s29, 1
      %s539 = scalar_lea.vmem %s8, %s538
      %p540 = pneg %p255
      %p541 = pneg %p252
      %p542 = scmp.lt.s32.totalorder %s29, 1
      %s543 = scalar_select %p542, %s29, 1
      %s544 = smul.addr %s543, 4
      %s545 = smul.addr %s544, 8
      %s546 = scalar_lea.vmem %s9, %s545
      %p547 = pneg %p281
      %p548 = pneg %p278
      %p549 = scmp.lt.s32.totalorder %s29, 1
      %s550 = scalar_select %p549, %s29, 1
      %s551 = scalar_lea.vmem %s10, %s550
      %p552 = pneg %p307
      %p553 = pneg %p304
      %p554 = scmp.lt.s32.totalorder %s29, 1
      %s555 = scalar_select %p554, %s29, 1
      %s556 = smul.addr %s555, 16
      %s557 = smul.addr %s556, 8
      %s558 = scalar_lea.vmem %s11, %s557
      %p559 = pneg %p333
      %p560 = pneg %p330
      %p561 = scmp.lt.s32.totalorder %s29, 1
      %s562 = scalar_select %p561, %s29, 1
      %s563 = scalar_lea.vmem %s12, %s562
      %p564 = pneg %p359
      %p565 = pneg %p356
      %p566 = pneg %p385
      %p567 = pneg %p382
      %p568 = scmp.lt.s32.totalorder %s28, 1
      %s569 = scalar_select %p568, %s28, 1
      %s570 = smul.addr %s569, 8
      %s571 = scalar_lea.vmem %s13, %s570
      %p572 = scmp.lt.s32.totalorder %s28, 1
      %s573 = scalar_select %p572, %s28, 1
      %s574 = smul.addr %s573, 2
      %s575 = smul.addr %s574, 8
      %s576 = scalar_lea.vmem %s0, %s575
      %p577 = scmp.lt.s32.totalorder %s28, 1
      %s578 = scalar_select %p577, %s28, 1
      %s579 = smul.addr %s578, 8
      %s580 = scalar_lea.vmem %s2, %s579
      %p581 = scmp.lt.s32.totalorder %s29, 1
      %s582 = scalar_select %p581, %s29, 1
      %s583 = smul.addr %s582, 4
      %s584 = scalar_lea.vmem %s4, %s583
      %p585 = scmp.lt.s32.totalorder %s29, 1
      %s586 = scalar_select %p585, %s29, 1
      %s587 = smul.addr %s586, 4
      %s588 = smul.addr %s587, 8
      %s589 = scalar_lea.vmem %s5, %s588
      %p590 = scmp.lt.s32.totalorder %s29, 1
      %s591 = scalar_select %p590, %s29, 1
      %s592 = scalar_lea.vmem %s6, %s591
      %p593 = scmp.lt.s32.totalorder %s29, 1
      %s594 = scalar_select %p593, %s29, 1
      %s595 = smul.addr %s594, 4
      %s596 = smul.addr %s595, 8
      %s597 = scalar_lea.vmem %s7, %s596
      %p598 = scmp.lt.s32.totalorder %s29, 1
      %s599 = scalar_select %p598, %s29, 1
      %s600 = scalar_lea.vmem %s8, %s599
      %p601 = scmp.lt.s32.totalorder %s29, 1
      %s602 = scalar_select %p601, %s29, 1
      %s603 = smul.addr %s602, 4
      %s604 = smul.addr %s603, 8
      %s605 = scalar_lea.vmem %s9, %s604
      %p606 = scmp.lt.s32.totalorder %s29, 1
      %s607 = scalar_select %p606, %s29, 1
      %s608 = scalar_lea.vmem %s10, %s607
      %p609 = scmp.lt.s32.totalorder %s29, 1
      %s610 = scalar_select %p609, %s29, 1
      %s611 = smul.addr %s610, 16
      %s612 = smul.addr %s611, 8
      %s613 = scalar_lea.vmem %s11, %s612
      %p614 = scmp.lt.s32.totalorder %s29, 1
      %s615 = scalar_select %p614, %s29, 1
      %s616 = scalar_lea.vmem %s12, %s615
      %p617 = scmp.lt.s32.totalorder %s28, 1
      %s618 = scalar_select %p617, %s28, 1
      %s619 = smul.addr %s618, 8
      %s620 = scalar_lea.vmem %s13, %s619
      %v621 = vld [vmem:[%s3] sm:$0xf]
      %v622 = vld [vmem:[%s584] sm:$0xf]
      %p623 = scmp.eq.s32.totalorder %s29, 0
      // Predicated region
      $region73: #{clip_forward.1} parent=71 // pred_check
        %p624 = pneg %p623
      $region74: #{clip_forward.1} parent=71 // pred_check_branch
        %626 = sbr.rel (%p624) target = $region76
      $region75: #{clip_forward.1} parent=71 // pred_region
        %v627 = vld [vmem:[%s576] sm:$0xff]
        %v628 = vld [vmem:[%s576 + $0x8] sm:$0xff]
        %v629 = vld [vmem:[%s1] sm:$0xff]
        %v630 = vld [vmem:[%s1 + $0x8] sm:$0xff]
        %v631 = vld [vmem:[%s1 + $0x10] sm:$0xff]
        %v632 = vld [vmem:[%s1 + $0x18] sm:$0xff]
        %v633 = vld [vmem:[%s1 + $0x20] sm:$0xff]
        %v634 = vld [vmem:[%s1 + $0x28] sm:$0xff]
        %v635 = vld [vmem:[%s1 + $0x30] sm:$0xff]
        %v636 = vld [vmem:[%s1 + $0x38] sm:$0xff]
        %v637 = vld [vmem:[%s1 + $0x40] sm:$0xff]
        %v638 = vld [vmem:[%s1 + $0x48] sm:$0xff]
        %v639 = vld [vmem:[%s1 + $0x50] sm:$0xff]
        %v640 = vld [vmem:[%s1 + $0x58] sm:$0xff]
        %v641 = vld [vmem:[%s1 + $0x60] sm:$0xff]
        %v642 = vld [vmem:[%s1 + $0x68] sm:$0xff]
        %v643 = vld [vmem:[%s1 + $0x70] sm:$0xff]
        %v644 = vld [vmem:[%s1 + $0x78] sm:$0xff]
        %v645 = vld [vmem:[%s1 + $0x80] sm:$0xff]
        %v646 = vld [vmem:[%s1 + $0x88] sm:$0xff]
        %v647 = vld [vmem:[%s1 + $0x90] sm:$0xff]
        %v648 = vld [vmem:[%s1 + $0x98] sm:$0xff]
        %v649 = vld [vmem:[%s1 + $0xa0] sm:$0xff]
        %v650 = vld [vmem:[%s1 + $0xa8] sm:$0xff]
        %v651 = vld [vmem:[%s1 + $0xb0] sm:$0xff]
        %v652 = vld [vmem:[%s1 + $0xb8] sm:$0xff]
        %v653 = vld [vmem:[%s580] sm:$0xff]
        %vm654 = vcmask 523264
        %v656 = vsel %vm654, %v628, 0
        %658 = vmatprep.subr.mxu0 0.0
        %659 = vmatpush1.msra.mxu0 %v629
        %660 = vmatprep.subr.mxu0 0.0
        %661 = vmatpush1.msra.mxu0 %v630
        %662 = vmatprep.subr.mxu0 0.0
        %663 = vmatpush1.msra.mxu0 %v631
        %664 = vmatprep.subr.mxu0 0.0
        %665 = vmatpush1.msra.mxu0 %v632
        %666 = vmatprep.subr.mxu0 0.0
        %667 = vmatpush1.msra.mxu0 %v633
        %668 = vmatprep.subr.mxu0 0.0
        %669 = vmatpush1.msra.mxu0 %v634
        %670 = vmatprep.subr.mxu0 0.0
        %671 = vmatpush1.msra.mxu0 %v635
        %672 = vmatprep.subr.mxu0 0.0
        %673 = vmatpush1.msra.mxu0 %v636
        %674 = vmatprep.subr.mxu0 0.0
        %675 = vmatpush1.msra.mxu0 %v637
        %676 = vmatprep.subr.mxu0 0.0
        %677 = vmatpush1.msra.mxu0 %v638
        %678 = vmatprep.subr.mxu0 0.0
        %679 = vmatpush1.msra.mxu0 %v639
        %680 = vmatprep.subr.mxu0 0.0
        %681 = vmatpush1.msra.mxu0 %v640
        %682 = vmatprep.subr.mxu0 0.0
        %683 = vmatpush1.msra.mxu0 %v641
        %684 = vmatprep.subr.mxu0 0.0
        %685 = vmatpush1.msra.mxu0 %v642
        %686 = vmatprep.subr.mxu0 0.0
        %687 = vmatpush1.msra.mxu0 %v643
        %688 = vmatprep.subr.mxu0 0.0
        %689 = vmatpush1.msra.mxu0 %v644
        %690 = vmatprep.subr.mxu0 0.0
        %691 = vmatpush1.msra.mxu0 %v645
        %692 = vmatprep.subr.mxu0 0.0
        %693 = vmatpush1.msra.mxu0 %v646
        %694 = vmatprep.subr.mxu0 0.0
        %695 = vmatpush1.msra.mxu0 %v647
        %696 = vmatprep.subr.mxu0 0.0
        %697 = vmatpush1.msra.mxu0 %v648
        %698 = vmatprep.subr.mxu0 0.0
        %699 = vmatpush1.msra.mxu0 %v649
        %700 = vmatprep.subr.mxu0 0.0
        %701 = vmatpush1.msra.mxu0 %v650
        %702 = vmatprep.subr.mxu0 0.0
        %703 = vmatpush1.msra.mxu0 %v651
        %704 = vmatprep.subr.mxu0 0.0
        %705 = vmatpush1.msra.mxu0 %v652
        %706 = vmatprep.subr.mxu0 0.0
        %707 = vmatpush1.msra.mxu0 0.0
        %708 = vmatprep.subr.mxu0 0.0
        %709 = vmatpush1.msra.mxu0 0.0
        %710 = vmatprep.subr.mxu0 0.0
        %711 = vmatpush1.msra.mxu0 0.0
        %712 = vmatprep.subr.mxu0 0.0
        %713 = vmatpush1.msra.mxu0 0.0
        %714 = vmatprep.subr.mxu0 0.0
        %715 = vmatpush1.msra.mxu0 0.0
        %716 = vmatprep.subr.mxu0 0.0
        %717 = vmatpush1.msra.mxu0 0.0
        %718 = vmatprep.subr.mxu0 0.0
        %719 = vmatpush1.msra.mxu0 0.0
        %720 = vmatprep.subr.mxu0 0.0
        %721 = vmatpush1.msra.mxu0 0.0
        %722 = vmatprep.mubr.f32.mxu0 %v656
        %723 = vmatmul.mubr.f32.gmra.mrb[0].mxu0 %v627
        %v724 = vpop.f32.mrb[0].mxu0
        %v725 = vadd.f32 %v653, %v724
        %v726 = vpop.f32.mrb[0].mxu0
        %727 = vdwg.mxu0
        %vm728 = vcmask 261120
        %v729 = vsel %vm728, %v725, 0.0
        %730 = vadd.xlane.f32.xlu0 %v729
        %v731 = vpop.xlane.xlu0 %730
        %v732 = vrcp.pop 32.0
        %v733 = vmul.f32 %v731, %v732
        %v734 = vsub.f32 %v725, %v733
        %v735 = vmul.f32 %v734, %v734
        %v736 = vsel %vm728, %v735, 0.0
        %737 = vadd.xlane.f32.xlu0 %v736
        %v738 = vpop.xlane.xlu0 %737
        %v739 = vmul.f32 %v738, %v732
        %v740 = vadd.f32 %v739, 1e-05
        %v741 = vrsqrt.pop %v740
        %v742 = vmul.f32 %v734, %v741
        %v743 = vlaneseq
        %v744 = vshrl.u32 %v743, 7
        %v745 = vsub.s32 0, %v744
        %v746 = vrot.slane %v621, %v745
        %v747 = vmul.f32 %v742, %v746
        %v748 = vlaneseq
        %v749 = vshrl.u32 %v748, 7
        %v750 = vsub.s32 1, %v749
        %v751 = vrot.slane %v621, %v750
        %v752 = vadd.f32 %v747, %v751
        %753 = vst.msk [vmem:[#allocation2] sm:$0xff] %vm728, %v752
      $region76: #{clip_forward.1} parent=71 // pred_fallthru
        _
      %v754 = vld [vmem:[#allocation2] sm:$0xff]
      %vm755 = vcmask 261120
      %v756 = vsel %vm755, %v754, 0.0
      %757 = vadd.xlane.f32.xlu0 %v756
      %v758 = vpop.xlane.xlu0 %757
      %v759 = vrcp.pop 32.0
      %v760 = vmul.f32 %v758, %v759
      %v761 = vsub.f32 %v754, %v760
      %v762 = vmul.f32 %v761, %v761
      %v763 = vsel %vm755, %v762, 0.0
      %764 = vadd.xlane.f32.xlu0 %v763
      %v765 = vpop.xlane.xlu0 %764
      %v766 = vmul.f32 %v765, %v759
      %v767 = vadd.f32 %v766, 1e-05
      %v768 = vrsqrt.pop %v767
      %v769 = vmul.f32 %v761, %v768
      %v770 = vlaneseq
      %v771 = vshrl.u32 %v770, 7
      %v772 = vsub.s32 0, %v771
      %v773 = vrot.slane %v622, %v772
      %v774 = vmul.f32 %v769, %v773
      %v775 = vlaneseq
      %v776 = vshrl.u32 %v775, 7
      %v777 = vsub.s32 1, %v776
      %v778 = vrot.slane %v622, %v777
      %v779 = vadd.f32 %v774, %v778
      %v780 = vld [vmem:[%s589] sm:$0xff]
      %v781 = vld [vmem:[%s589 + $0x8] sm:$0xff]
      %v782 = vld [vmem:[%s589 + $0x10] sm:$0xff]
      %v783 = vld [vmem:[%s589 + $0x18] sm:$0xff]
      %v784 = vld [vmem:[%s592] sm:$0x1]
      %v786 = vlaneseq
      %v787 = vshrl.u32 %v786, 7
      %v788 = vsub.s32 0, %v787
      %v789 = vrot.slane %v784, %v788
      %v792 = vsel %vm755, %v779, 0
      %794 = vmatprep.subr.mxu0 0.0
      %795 = vmatpush1.msra.mxu0 %v780
      %796 = vmatprep.subr.mxu0 0.0
      %797 = vmatpush1.msra.mxu0 %v781
      %798 = vmatprep.subr.mxu0 0.0
      %799 = vmatpush1.msra.mxu0 %v782
      %800 = vmatprep.subr.mxu0 0.0
      %801 = vmatpush1.msra.mxu0 %v783
      %802 = vmatprep.subr.mxu0 0.0
      %803 = vmatpush1.msra.mxu0 0.0
      %804 = vmatprep.subr.mxu0 0.0
      %805 = vmatpush1.msra.mxu0 0.0
      %806 = vmatprep.subr.mxu0 0.0
      %807 = vmatpush1.msra.mxu0 0.0
      %808 = vmatprep.subr.mxu0 0.0
      %809 = vmatpush1.msra.mxu0 0.0
      %810 = vmatprep.subr.mxu0 0.0
      %811 = vmatpush1.msra.mxu0 0.0
      %812 = vmatprep.subr.mxu0 0.0
      %813 = vmatpush1.msra.mxu0 0.0
      %814 = vmatprep.subr.mxu0 0.0
      %815 = vmatpush1.msra.mxu0 0.0
      %816 = vmatprep.subr.mxu0 0.0
      %817 = vmatpush1.msra.mxu0 0.0
      %818 = vmatprep.subr.mxu0 0.0
      %819 = vmatpush1.msra.mxu0 0.0
      %820 = vmatprep.subr.mxu0 0.0
      %821 = vmatpush1.msra.mxu0 0.0
      %822 = vmatprep.subr.mxu0 0.0
      %823 = vmatpush1.msra.mxu0 0.0
      %824 = vmatprep.subr.mxu0 0.0
      %825 = vmatpush1.msra.mxu0 0.0
      %826 = vmatprep.subr.mxu0 0.0
      %827 = vmatpush1.msra.mxu0 0.0
      %828 = vmatprep.subr.mxu0 0.0
      %829 = vmatpush1.msra.mxu0 0.0
      %830 = vmatprep.subr.mxu0 0.0
      %831 = vmatpush1.msra.mxu0 0.0
      %832 = vmatprep.subr.mxu0 0.0
      %833 = vmatpush1.msra.mxu0 0.0
      %834 = vmatprep.subr.mxu0 0.0
      %835 = vmatpush1.msra.mxu0 0.0
      %836 = vmatprep.subr.mxu0 0.0
      %837 = vmatpush1.msra.mxu0 0.0
      %838 = vmatprep.subr.mxu0 0.0
      %839 = vmatpush1.msra.mxu0 0.0
      %840 = vmatprep.subr.mxu0 0.0
      %841 = vmatpush1.msra.mxu0 0.0
      %842 = vmatprep.subr.mxu0 0.0
      %843 = vmatpush1.msra.mxu0 0.0
      %844 = vmatprep.subr.mxu0 0.0
      %845 = vmatpush1.msra.mxu0 0.0
      %846 = vmatprep.subr.mxu0 0.0
      %847 = vmatpush1.msra.mxu0 0.0
      %848 = vmatprep.subr.mxu0 0.0
      %849 = vmatpush1.msra.mxu0 0.0
      %850 = vmatprep.subr.mxu0 0.0
      %851 = vmatpush1.msra.mxu0 0.0
      %852 = vmatprep.subr.mxu0 0.0
      %853 = vmatpush1.msra.mxu0 0.0
      %854 = vmatprep.subr.mxu0 0.0
      %855 = vmatpush1.msra.mxu0 0.0
      %856 = vmatprep.subr.mxu0 0.0
      %857 = vmatpush1.msra.mxu0 0.0
      %858 = vmatprep.mubr.f32.mxu0 0.0
      %859 = vmatmul.mubr.f32.gmra.mrb[0].mxu0 %v792
      %v860 = vpop.f32.mrb[0].mxu0
      %v861 = vadd.f32 %v789, %v860
      %v862 = vpop.f32.mrb[0].mxu0
      %863 = vdwg.mxu0
      %v864 = vlaneseq
      %v865 = vand.u32 %v864, 127
      %vm866 = vcmp.lt.s32.totalorder %v865, 5
      %v867 = vmul.f32 %v861, 0.35355338
      %869 = vrot.lane.b32.xlu0 %v861, 96
      %v870 = vpop.permute.xlu0 %869
      %vm871 = vcmask 64512
      %v873 = vsel %vm871, %v867, 0
      %v875 = vsel %vm871, %v870, 0
      %877 = vmatprep.subr.mxu0 0.0
      %878 = vmatpush1.xpose.msra.mxu0 %v875
      %879 = vmatprep.subr.mxu0 0.0
      %880 = vmatpush1.xpose.msra.mxu0 0.0
      %881 = vmatprep.subr.mxu0 0.0
      %882 = vmatpush1.xpose.msra.mxu0 0.0
      %883 = vmatprep.subr.mxu0 0.0
      %884 = vmatpush1.xpose.msra.mxu0 0.0
      %885 = vmatprep.subr.mxu0 0.0
      %886 = vmatpush1.xpose.msra.mxu0 0.0
      %887 = vmatprep.subr.mxu0 0.0
      %888 = vmatpush1.xpose.msra.mxu0 0.0
      %889 = vmatprep.subr.mxu0 0.0
      %890 = vmatpush1.xpose.msra.mxu0 0.0
      %891 = vmatprep.subr.mxu0 0.0
      %892 = vmatpush1.xpose.msra.mxu0 0.0
      %893 = vmatprep.subr.mxu0 0.0
      %894 = vmatpush1.xpose.msra.mxu0 0.0
      %895 = vmatprep.subr.mxu0 0.0
      %896 = vmatpush1.xpose.msra.mxu0 0.0
      %897 = vmatprep.subr.mxu0 0.0
      %898 = vmatpush1.xpose.msra.mxu0 0.0
      %899 = vmatprep.subr.mxu0 0.0
      %900 = vmatpush1.xpose.msra.mxu0 0.0
      %901 = vmatprep.subr.mxu0 0.0
      %902 = vmatpush1.xpose.msra.mxu0 0.0
      %903 = vmatprep.subr.mxu0 0.0
      %904 = vmatpush1.xpose.msra.mxu0 0.0
      %905 = vmatprep.subr.mxu0 0.0
      %906 = vmatpush1.xpose.msra.mxu0 0.0
      %907 = vmatprep.subr.mxu0 0.0
      %908 = vmatpush1.xpose.msra.mxu0 0.0
      %909 = vmatprep.subr.mxu0 0.0
      %910 = vmatpush1.xpose.msra.mxu0 0.0
      %911 = vmatprep.subr.mxu0 0.0
      %912 = vmatpush1.xpose.msra.mxu0 0.0
      %913 = vmatprep.subr.mxu0 0.0
      %914 = vmatpush1.xpose.msra.mxu0 0.0
      %915 = vmatprep.subr.mxu0 0.0
      %916 = vmatpush1.xpose.msra.mxu0 0.0
      %917 = vmatprep.subr.mxu0 0.0
      %918 = vmatpush1.xpose.msra.mxu0 0.0
      %919 = vmatprep.subr.mxu0 0.0
      %920 = vmatpush1.xpose.msra.mxu0 0.0
      %921 = vmatprep.subr.mxu0 0.0
      %922 = vmatpush1.xpose.msra.mxu0 0.0
      %923 = vmatprep.subr.mxu0 0.0
      %924 = vmatpush1.xpose.msra.mxu0 0.0
      %925 = vmatprep.subr.mxu0 0.0
      %926 = vmatpush1.xpose.msra.mxu0 0.0
      %927 = vmatprep.subr.mxu0 0.0
      %928 = vmatpush1.xpose.msra.mxu0 0.0
      %929 = vmatprep.subr.mxu0 0.0
      %930 = vmatpush1.xpose.msra.mxu0 0.0
      %931 = vmatprep.subr.mxu0 0.0
      %932 = vmatpush1.xpose.msra.mxu0 0.0
      %933 = vmatprep.subr.mxu0 0.0
      %934 = vmatpush1.xpose.msra.mxu0 0.0
      %935 = vmatprep.subr.mxu0 0.0
      %936 = vmatpush1.xpose.msra.mxu0 0.0
      %937 = vmatprep.subr.mxu0 0.0
      %938 = vmatpush1.xpose.msra.mxu0 0.0
      %939 = vmatprep.subr.mxu0 0.0
      %940 = vmatpush1.xpose.msra.mxu0 0.0
      %941 = vmatprep.mubr.f32.mxu0 0.0
      %942 = vmatmul.mubr.f32.gmra.mrb[0].mxu0 %v873
      %v943 = vpop.f32.mrb[0].mxu0
      %v944 = vadd.f32 0.0, %v943
      %v945 = vpop.f32.mrb[0].mxu0
      %946 = vdwg.mxu0
      %v947 = vsel %vm866, %v944, -1e+09
      %v948 = vsel %vm871, %v947, -inf
      %949 = vmax.xlane.f32.xlu0 %v948
      %v950 = vpop.xlane.xlu0 %949
      %v951 = vsub.f32 %v947, %v950
      %v952 = vmul.f32 %v951, 1.442695
      %v953 = vpow.pop %v952
      %v954 = vsel %vm871, %v953, 0.0
      %955 = vadd.xlane.f32.xlu0 %v954
      %v956 = vpop.xlane.xlu0 %955
      %v957 = vrcp.pop %v956
      %v958 = vmul.f32 %v953, %v957
      %959 = vrot.lane.b32.xlu0 %v861, 64
      %v960 = vpop.permute.xlu0 %959
      %v963 = vsel %vm871, %v958, 0
      %965 = vmatprep.subr.mxu0 0.0
      %966 = vmatpush1.msra.mxu0 %v960
      %967 = vmatprep.subr.mxu0 0.0
      %968 = vmatpush1.msra.mxu0 0.0
      %969 = vmatprep.subr.mxu0 0.0
      %970 = vmatpush1.msra.mxu0 0.0
      %971 = vmatprep.subr.mxu0 0.0
      %972 = vmatpush1.msra.mxu0 0.0
      %973 = vmatprep.subr.mxu0 0.0
      %974 = vmatpush1.msra.mxu0 0.0
      %975 = vmatprep.subr.mxu0 0.0
      %976 = vmatpush1.msra.mxu0 0.0
      %977 = vmatprep.subr.mxu0 0.0
      %978 = vmatpush1.msra.mxu0 0.0
      %979 = vmatprep.subr.mxu0 0.0
      %980 = vmatpush1.msra.mxu0 0.0
      %981 = vmatprep.subr.mxu0 0.0
      %982 = vmatpush1.msra.mxu0 0.0
      %983 = vmatprep.subr.mxu0 0.0
      %984 = vmatpush1.msra.mxu0 0.0
      %985 = vmatprep.subr.mxu0 0.0
      %986 = vmatpush1.msra.mxu0 0.0
      %987 = vmatprep.subr.mxu0 0.0
      %988 = vmatpush1.msra.mxu0 0.0
      %989 = vmatprep.subr.mxu0 0.0
      %990 = vmatpush1.msra.mxu0 0.0
      %991 = vmatprep.subr.mxu0 0.0
      %992 = vmatpush1.msra.mxu0 0.0
      %993 = vmatprep.subr.mxu0 0.0
      %994 = vmatpush1.msra.mxu0 0.0
      %995 = vmatprep.subr.mxu0 0.0
      %996 = vmatpush1.msra.mxu0 0.0
      %997 = vmatprep.subr.mxu0 0.0
      %998 = vmatpush1.msra.mxu0 0.0
      %999 = vmatprep.subr.mxu0 0.0
      %1000 = vmatpush1.msra.mxu0 0.0
      %1001 = vmatprep.subr.mxu0 0.0
      %1002 = vmatpush1.msra.mxu0 0.0
      %1003 = vmatprep.subr.mxu0 0.0
      %1004 = vmatpush1.msra.mxu0 0.0
      %1005 = vmatprep.subr.mxu0 0.0
      %1006 = vmatpush1.msra.mxu0 0.0
      %1007 = vmatprep.subr.mxu0 0.0
      %1008 = vmatpush1.msra.mxu0 0.0
      %1009 = vmatprep.subr.mxu0 0.0
      %1010 = vmatpush1.msra.mxu0 0.0
      %1011 = vmatprep.subr.mxu0 0.0
      %1012 = vmatpush1.msra.mxu0 0.0
      %1013 = vmatprep.subr.mxu0 0.0
      %1014 = vmatpush1.msra.mxu0 0.0
      %1015 = vmatprep.subr.mxu0 0.0
      %1016 = vmatpush1.msra.mxu0 0.0
      %1017 = vmatprep.subr.mxu0 0.0
      %1018 = vmatpush1.msra.mxu0 0.0
      %1019 = vmatprep.subr.mxu0 0.0
      %1020 = vmatpush1.msra.mxu0 0.0
      %1021 = vmatprep.subr.mxu0 0.0
      %1022 = vmatpush1.msra.mxu0 0.0
      %1023 = vmatprep.subr.mxu0 0.0
      %1024 = vmatpush1.msra.mxu0 0.0
      %1025 = vmatprep.subr.mxu0 0.0
      %1026 = vmatpush1.msra.mxu0 0.0
      %1027 = vmatprep.subr.mxu0 0.0
      %1028 = vmatpush1.msra.mxu0 0.0
      %1029 = vmatprep.mubr.f32.mxu0 0.0
      %1030 = vmatmul.mubr.f32.gmra.mrb[0].mxu0 %v963
      %v1031 = vpop.f32.mrb[0].mxu0
      %v1032 = vadd.f32 0.0, %v1031
      %v1033 = vpop.f32.mrb[0].mxu0
      %1034 = vdwg.mxu0
      %1035 = vrot.lane.b32.xlu0 %v867, 120
      %v1036 = vpop.permute.xlu0 %1035
      %1037 = vrot.lane.b32.xlu0 %v861, 88
      %v1038 = vpop.permute.xlu0 %1037
      %v1039 = vsel %vm871, %v1036, 0
      %v1041 = vsel %vm871, %v1038, 0
      %1043 = vmatprep.subr.mxu0 0.0
      %1044 = vmatpush1.xpose.msra.mxu0 %v1041
      %1045 = vmatprep.subr.mxu0 0.0
      %1046 = vmatpush1.xpose.msra.mxu0 0.0
      %1047 = vmatprep.subr.mxu0 0.0
      %1048 = vmatpush1.xpose.msra.mxu0 0.0
      %1049 = vmatprep.subr.mxu0 0.0
      %1050 = vmatpush1.xpose.msra.mxu0 0.0
      %1051 = vmatprep.subr.mxu0 0.0
      %1052 = vmatpush1.xpose.msra.mxu0 0.0
      %1053 = vmatprep.subr.mxu0 0.0
      %1054 = vmatpush1.xpose.msra.mxu0 0.0
      %1055 = vmatprep.subr.mxu0 0.0
      %1056 = vmatpush1.xpose.msra.mxu0 0.0
      %1057 = vmatprep.subr.mxu0 0.0
      %1058 = vmatpush1.xpose.msra.mxu0 0.0
      %1059 = vmatprep.subr.mxu0 0.0
      %1060 = vmatpush1.xpose.msra.mxu0 0.0
      %1061 = vmatprep.subr.mxu0 0.0
      %1062 = vmatpush1.xpose.msra.mxu0 0.0
      %1063 = vmatprep.subr.mxu0 0.0
      %1064 = vmatpush1.xpose.msra.mxu0 0.0
      %1065 = vmatprep.subr.mxu0 0.0
      %1066 = vmatpush1.xpose.msra.mxu0 0.0
      %1067 = vmatprep.subr.mxu0 0.0
      %1068 = vmatpush1.xpose.msra.mxu0 0.0
      %1069 = vmatprep.subr.mxu0 0.0
      %1070 = vmatpush1.xpose.msra.mxu0 0.0
      %1071 = vmatprep.subr.mxu0 0.0
      %1072 = vmatpush1.xpose.msra.mxu0 0.0
      %1073 = vmatprep.subr.mxu0 0.0
      %1074 = vmatpush1.xpose.msra.mxu0 0.0
      %1075 = vmatprep.subr.mxu0 0.0
      %1076 = vmatpush1.xpose.msra.mxu0 0.0
      %1077 = vmatprep.subr.mxu0 0.0
      %1078 = vmatpush1.xpose.msra.mxu0 0.0
      %1079 = vmatprep.subr.mxu0 0.0
      %1080 = vmatpush1.xpose.msra.mxu0 0.0
      %1081 = vmatprep.subr.mxu0 0.0
      %1082 = vmatpush1.xpose.msra.mxu0 0.0
      %1083 = vmatprep.subr.mxu0 0.0
      %1084 = vmatpush1.xpose.msra.mxu0 0.0
      %1085 = vmatprep.subr.mxu0 0.0
      %1086 = vmatpush1.xpose.msra.mxu0 0.0
      %1087 = vmatprep.subr.mxu0 0.0
      %1088 = vmatpush1.xpose.msra.mxu0 0.0
      %1089 = vmatprep.subr.mxu0 0.0
      %1090 = vmatpush1.xpose.msra.mxu0 0.0
      %1091 = vmatprep.subr.mxu0 0.0
      %1092 = vmatpush1.xpose.msra.mxu0 0.0
      %1093 = vmatprep.subr.mxu0 0.0
      %1094 = vmatpush1.xpose.msra.mxu0 0.0
      %1095 = vmatprep.subr.mxu0 0.0
      %1096 = vmatpush1.xpose.msra.mxu0 0.0
      %1097 = vmatprep.subr.mxu0 0.0
      %1098 = vmatpush1.xpose.msra.mxu0 0.0
      %1099 = vmatprep.subr.mxu0 0.0
      %1100 = vmatpush1.xpose.msra.mxu0 0.0
      %1101 = vmatprep.subr.mxu0 0.0
      %1102 = vmatpush1.xpose.msra.mxu0 0.0
      %1103 = vmatprep.subr.mxu0 0.0
      %1104 = vmatpush1.xpose.msra.mxu0 0.0
      %1105 = vmatprep.subr.mxu0 0.0
      %1106 = vmatpush1.xpose.msra.mxu0 0.0
      %1107 = vmatprep.mubr.f32.mxu0 0.0
      %1108 = vmatmul.mubr.f32.gmra.mrb[0].mxu0 %v1039
      %v1109 = vpop.f32.mrb[0].mxu0
      %v1110 = vadd.f32 0.0, %v1109
      %v1111 = vpop.f32.mrb[0].mxu0
      %1112 = vdwg.mxu0
      %v1113 = vsel %vm866, %v1110, -1e+09
      %v1114 = vsel %vm871, %v1113, -inf
      %1115 = vmax.xlane.f32.xlu0 %v1114
      %v1116 = vpop.xlane.xlu0 %1115
      %v1117 = vsub.f32 %v1113, %v1116
      %v1118 = vmul.f32 %v1117, 1.442695
      %v1119 = vpow.pop %v1118
      %v1120 = vsel %vm871, %v1119, 0.0
      %1121 = vadd.xlane.f32.xlu0 %v1120
      %v1122 = vpop.xlane.xlu0 %1121
      %v1123 = vrcp.pop %v1122
      %v1124 = vmul.f32 %v1119, %v1123
      %1125 = vrot.lane.b32.xlu0 %v861, 56
      %v1126 = vpop.permute.xlu0 %1125
      %v1129 = vsel %vm871, %v1124, 0
      %1131 = vmatprep.subr.mxu0 0.0
      %1132 = vmatpush1.msra.mxu0 %v1126
      %1133 = vmatprep.subr.mxu0 0.0
      %1134 = vmatpush1.msra.mxu0 0.0
      %1135 = vmatprep.subr.mxu0 0.0
      %1136 = vmatpush1.msra.mxu0 0.0
      %1137 = vmatprep.subr.mxu0 0.0
      %1138 = vmatpush1.msra.mxu0 0.0
      %1139 = vmatprep.subr.mxu0 0.0
      %1140 = vmatpush1.msra.mxu0 0.0
      %1141 = vmatprep.subr.mxu0 0.0
      %1142 = vmatpush1.msra.mxu0 0.0
      %1143 = vmatprep.subr.mxu0 0.0
      %1144 = vmatpush1.msra.mxu0 0.0
      %1145 = vmatprep.subr.mxu0 0.0
      %1146 = vmatpush1.msra.mxu0 0.0
      %1147 = vmatprep.subr.mxu0 0.0
      %1148 = vmatpush1.msra.mxu0 0.0
      %1149 = vmatprep.subr.mxu0 0.0
      %1150 = vmatpush1.msra.mxu0 0.0
      %1151 = vmatprep.subr.mxu0 0.0
      %1152 = vmatpush1.msra.mxu0 0.0
      %1153 = vmatprep.subr.mxu0 0.0
      %1154 = vmatpush1.msra.mxu0 0.0
      %1155 = vmatprep.subr.mxu0 0.0
      %1156 = vmatpush1.msra.mxu0 0.0
      %1157 = vmatprep.subr.mxu0 0.0
      %1158 = vmatpush1.msra.mxu0 0.0
      %1159 = vmatprep.subr.mxu0 0.0
      %1160 = vmatpush1.msra.mxu0 0.0
      %1161 = vmatprep.subr.mxu0 0.0
      %1162 = vmatpush1.msra.mxu0 0.0
      %1163 = vmatprep.subr.mxu0 0.0
      %1164 = vmatpush1.msra.mxu0 0.0
      %1165 = vmatprep.subr.mxu0 0.0
      %1166 = vmatpush1.msra.mxu0 0.0
      %1167 = vmatprep.subr.mxu0 0.0
      %1168 = vmatpush1.msra.mxu0 0.0
      %1169 = vmatprep.subr.mxu0 0.0
      %1170 = vmatpush1.msra.mxu0 0.0
      %1171 = vmatprep.subr.mxu0 0.0
      %1172 = vmatpush1.msra.mxu0 0.0
      %1173 = vmatprep.subr.mxu0 0.0
      %1174 = vmatpush1.msra.mxu0 0.0
      %1175 = vmatprep.subr.mxu0 0.0
      %1176 = vmatpush1.msra.mxu0 0.0
      %1177 = vmatprep.subr.mxu0 0.0
      %1178 = vmatpush1.msra.mxu0 0.0
      %1179 = vmatprep.subr.mxu0 0.0
      %1180 = vmatpush1.msra.mxu0 0.0
      %1181 = vmatprep.subr.mxu0 0.0
      %1182 = vmatpush1.msra.mxu0 0.0
      %1183 = vmatprep.subr.mxu0 0.0
      %1184 = vmatpush1.msra.mxu0 0.0
      %1185 = vmatprep.subr.mxu0 0.0
      %1186 = vmatpush1.msra.mxu0 0.0
      %1187 = vmatprep.subr.mxu0 0.0
      %1188 = vmatpush1.msra.mxu0 0.0
      %1189 = vmatprep.subr.mxu0 0.0
      %1190 = vmatpush1.msra.mxu0 0.0
      %1191 = vmatprep.subr.mxu0 0.0
      %1192 = vmatpush1.msra.mxu0 0.0
      %1193 = vmatprep.subr.mxu0 0.0
      %1194 = vmatpush1.msra.mxu0 0.0
      %1195 = vmatprep.mubr.f32.mxu0 0.0
      %1196 = vmatmul.mubr.f32.gmra.mrb[0].mxu0 %v1129
      %v1197 = vpop.f32.mrb[0].mxu0
      %v1198 = vadd.f32 0.0, %v1197
      %v1199 = vpop.f32.mrb[0].mxu0
      %1200 = vdwg.mxu0
      %1201 = vrot.lane.b32.xlu0 %v867, 112
      %v1202 = vpop.permute.xlu0 %1201
      %1203 = vrot.lane.b32.xlu0 %v861, 80
      %v1204 = vpop.permute.xlu0 %1203
      %v1205 = vsel %vm871, %v1202, 0
      %v1207 = vsel %vm871, %v1204, 0
      %1209 = vmatprep.subr.mxu0 0.0
      %1210 = vmatpush1.xpose.msra.mxu0 %v1207
      %1211 = vmatprep.subr.mxu0 0.0
      %1212 = vmatpush1.xpose.msra.mxu0 0.0
      %1213 = vmatprep.subr.mxu0 0.0
      %1214 = vmatpush1.xpose.msra.mxu0 0.0
      %1215 = vmatprep.subr.mxu0 0.0
      %1216 = vmatpush1.xpose.msra.mxu0 0.0
      %1217 = vmatprep.subr.mxu0 0.0
      %1218 = vmatpush1.xpose.msra.mxu0 0.0
      %1219 = vmatprep.subr.mxu0 0.0
      %1220 = vmatpush1.xpose.msra.mxu0 0.0
      %1221 = vmatprep.subr.mxu0 0.0
      %1222 = vmatpush1.xpose.msra.mxu0 0.0
      %1223 = vmatprep.subr.mxu0 0.0
      %1224 = vmatpush1.xpose.msra.mxu0 0.0
      %1225 = vmatprep.subr.mxu0 0.0
      %1226 = vmatpush1.xpose.msra.mxu0 0.0
      %1227 = vmatprep.subr.mxu0 0.0
      %1228 = vmatpush1.xpose.msra.mxu0 0.0
      %1229 = vmatprep.subr.mxu0 0.0
      %1230 = vmatpush1.xpose.msra.mxu0 0.0
      %1231 = vmatprep.subr.mxu0 0.0
      %1232 = vmatpush1.xpose.msra.mxu0 0.0
      %1233 = vmatprep.subr.mxu0 0.0
      %1234 = vmatpush1.xpose.msra.mxu0 0.0
      %1235 = vmatprep.subr.mxu0 0.0
      %1236 = vmatpush1.xpose.msra.mxu0 0.0
      %1237 = vmatprep.subr.mxu0 0.0
      %1238 = vmatpush1.xpose.msra.mxu0 0.0
      %1239 = vmatprep.subr.mxu0 0.0
      %1240 = vmatpush1.xpose.msra.mxu0 0.0
      %1241 = vmatprep.subr.mxu0 0.0
      %1242 = vmatpush1.xpose.msra.mxu0 0.0
      %1243 = vmatprep.subr.mxu0 0.0
      %1244 = vmatpush1.xpose.msra.mxu0 0.0
      %1245 = vmatprep.subr.mxu0 0.0
      %1246 = vmatpush1.xpose.msra.mxu0 0.0
      %1247 = vmatprep.subr.mxu0 0.0
      %1248 = vmatpush1.xpose.msra.mxu0 0.0
      %1249 = vmatprep.subr.mxu0 0.0
      %1250 = vmatpush1.xpose.msra.mxu0 0.0
      %1251 = vmatprep.subr.mxu0 0.0
      %1252 = vmatpush1.xpose.msra.mxu0 0.0
      %1253 = vmatprep.subr.mxu0 0.0
      %1254 = vmatpush1.xpose.msra.mxu0 0.0
      %1255 = vmatprep.subr.mxu0 0.0
      %1256 = vmatpush1.xpose.msra.mxu0 0.0
      %1257 = vmatprep.subr.mxu0 0.0
      %1258 = vmatpush1.xpose.msra.mxu0 0.0
      %1259 = vmatprep.subr.mxu0 0.0
      %1260 = vmatpush1.xpose.msra.mxu0 0.0
      %1261 = vmatprep.subr.mxu0 0.0
      %1262 = vmatpush1.xpose.msra.mxu0 0.0
      %1263 = vmatprep.subr.mxu0 0.0
      %1264 = vmatpush1.xpose.msra.mxu0 0.0
      %1265 = vmatprep.subr.mxu0 0.0
      %1266 = vmatpush1.xpose.msra.mxu0 0.0
      %1267 = vmatprep.subr.mxu0 0.0
      %1268 = vmatpush1.xpose.msra.mxu0 0.0
      %1269 = vmatprep.subr.mxu0 0.0
      %1270 = vmatpush1.xpose.msra.mxu0 0.0
      %1271 = vmatprep.subr.mxu0 0.0
      %1272 = vmatpush1.xpose.msra.mxu0 0.0
      %1273 = vmatprep.mubr.f32.mxu0 0.0
      %1274 = vmatmul.mubr.f32.gmra.mrb[0].mxu0 %v1205
      %v1275 = vpop.f32.mrb[0].mxu0
      %v1276 = vadd.f32 0.0, %v1275
      %v1277 = vpop.f32.mrb[0].mxu0
      %1278 = vdwg.mxu0
      %v1279 = vsel %vm866, %v1276, -1e+09
      %v1280 = vsel %vm871, %v1279, -inf
      %1281 = vmax.xlane.f32.xlu0 %v1280
      %v1282 = vpop.xlane.xlu0 %1281
      %v1283 = vsub.f32 %v1279, %v1282
      %v1284 = vmul.f32 %v1283, 1.442695
      %v1285 = vpow.pop %v1284
      %v1286 = vsel %vm871, %v1285, 0.0
      %1287 = vadd.xlane.f32.xlu0 %v1286
      %v1288 = vpop.xlane.xlu0 %1287
      %v1289 = vrcp.pop %v1288
      %v1290 = vmul.f32 %v1285, %v1289
      %1291 = vrot.lane.b32.xlu0 %v861, 48
      %v1292 = vpop.permute.xlu0 %1291
      %v1295 = vsel %vm871, %v1290, 0
      %1297 = vmatprep.subr.mxu0 0.0
      %1298 = vmatpush1.msra.mxu0 %v1292
      %1299 = vmatprep.subr.mxu0 0.0
      %1300 = vmatpush1.msra.mxu0 0.0
      %1301 = vmatprep.subr.mxu0 0.0
      %1302 = vmatpush1.msra.mxu0 0.0
      %1303 = vmatprep.subr.mxu0 0.0
      %1304 = vmatpush1.msra.mxu0 0.0
      %1305 = vmatprep.subr.mxu0 0.0
      %1306 = vmatpush1.msra.mxu0 0.0
      %1307 = vmatprep.subr.mxu0 0.0
      %1308 = vmatpush1.msra.mxu0 0.0
      %1309 = vmatprep.subr.mxu0 0.0
      %1310 = vmatpush1.msra.mxu0 0.0
      %1311 = vmatprep.subr.mxu0 0.0
      %1312 = vmatpush1.msra.mxu0 0.0
      %1313 = vmatprep.subr.mxu0 0.0
      %1314 = vmatpush1.msra.mxu0 0.0
      %1315 = vmatprep.subr.mxu0 0.0
      %1316 = vmatpush1.msra.mxu0 0.0
      %1317 = vmatprep.subr.mxu0 0.0
      %1318 = vmatpush1.msra.mxu0 0.0
      %1319 = vmatprep.subr.mxu0 0.0
      %1320 = vmatpush1.msra.mxu0 0.0
      %1321 = vmatprep.subr.mxu0 0.0
      %1322 = vmatpush1.msra.mxu0 0.0
      %1323 = vmatprep.subr.mxu0 0.0
      %1324 = vmatpush1.msra.mxu0 0.0
      %1325 = vmatprep.subr.mxu0 0.0
      %1326 = vmatpush1.msra.mxu0 0.0
      %1327 = vmatprep.subr.mxu0 0.0
      %1328 = vmatpush1.msra.mxu0 0.0
      %1329 = vmatprep.subr.mxu0 0.0
      %1330 = vmatpush1.msra.mxu0 0.0
      %1331 = vmatprep.subr.mxu0 0.0
      %1332 = vmatpush1.msra.mxu0 0.0
      %1333 = vmatprep.subr.mxu0 0.0
      %1334 = vmatpush1.msra.mxu0 0.0
      %1335 = vmatprep.subr.mxu0 0.0
      %1336 = vmatpush1.msra.mxu0 0.0
      %1337 = vmatprep.subr.mxu0 0.0
      %1338 = vmatpush1.msra.mxu0 0.0
      %1339 = vmatprep.subr.mxu0 0.0
      %1340 = vmatpush1.msra.mxu0 0.0
      %1341 = vmatprep.subr.mxu0 0.0
      %1342 = vmatpush1.msra.mxu0 0.0
      %1343 = vmatprep.subr.mxu0 0.0
      %1344 = vmatpush1.msra.mxu0 0.0
      %1345 = vmatprep.subr.mxu0 0.0
      %1346 = vmatpush1.msra.mxu0 0.0
      %1347 = vmatprep.subr.mxu0 0.0
      %1348 = vmatpush1.msra.mxu0 0.0
      %1349 = vmatprep.subr.mxu0 0.0
      %1350 = vmatpush1.msra.mxu0 0.0
      %1351 = vmatprep.subr.mxu0 0.0
      %1352 = vmatpush1.msra.mxu0 0.0
      %1353 = vmatprep.subr.mxu0 0.0
      %1354 = vmatpush1.msra.mxu0 0.0
      %1355 = vmatprep.subr.mxu0 0.0
      %1356 = vmatpush1.msra.mxu0 0.0
      %1357 = vmatprep.subr.mxu0 0.0
      %1358 = vmatpush1.msra.mxu0 0.0
      %1359 = vmatprep.subr.mxu0 0.0
      %1360 = vmatpush1.msra.mxu0 0.0
      %1361 = vmatprep.mubr.f32.mxu0 0.0
      %1362 = vmatmul.mubr.f32.gmra.mrb[0].mxu0 %v1295
      %v1363 = vpop.f32.mrb[0].mxu0
      %v1364 = vadd.f32 0.0, %v1363
      %v1365 = vpop.f32.mrb[0].mxu0
      %1366 = vdwg.mxu0
      %1367 = vrot.lane.b32.xlu0 %v867, 104
      %v1368 = vpop.permute.xlu0 %1367
      %1369 = vrot.lane.b32.xlu0 %v861, 72
      %v1370 = vpop.permute.xlu0 %1369
      %v1371 = vsel %vm871, %v1368, 0
      %v1373 = vsel %vm871, %v1370, 0
      %1375 = vmatprep.subr.mxu0 0.0
      %1376 = vmatpush1.xpose.msra.mxu0 %v1373
      %1377 = vmatprep.subr.mxu0 0.0
      %1378 = vmatpush1.xpose.msra.mxu0 0.0
      %1379 = vmatprep.subr.mxu0 0.0
      %1380 = vmatpush1.xpose.msra.mxu0 0.0
      %1381 = vmatprep.subr.mxu0 0.0
      %1382 = vmatpush1.xpose.msra.mxu0 0.0
      %1383 = vmatprep.subr.mxu0 0.0
      %1384 = vmatpush1.xpose.msra.mxu0 0.0
      %1385 = vmatprep.subr.mxu0 0.0
      %1386 = vmatpush1.xpose.msra.mxu0 0.0
      %1387 = vmatprep.subr.mxu0 0.0
      %1388 = vmatpush1.xpose.msra.mxu0 0.0
      %1389 = vmatprep.subr.mxu0 0.0
      %1390 = vmatpush1.xpose.msra.mxu0 0.0
      %1391 = vmatprep.subr.mxu0 0.0
      %1392 = vmatpush1.xpose.msra.mxu0 0.0
      %1393 = vmatprep.subr.mxu0 0.0
      %1394 = vmatpush1.xpose.msra.mxu0 0.0
      %1395 = vmatprep.subr.mxu0 0.0
      %1396 = vmatpush1.xpose.msra.mxu0 0.0
      %1397 = vmatprep.subr.mxu0 0.0
      %1398 = vmatpush1.xpose.msra.mxu0 0.0
      %1399 = vmatprep.subr.mxu0 0.0
      %1400 = vmatpush1.xpose.msra.mxu0 0.0
      %1401 = vmatprep.subr.mxu0 0.0
      %1402 = vmatpush1.xpose.msra.mxu0 0.0
      %1403 = vmatprep.subr.mxu0 0.0
      %1404 = vmatpush1.xpose.msra.mxu0 0.0
      %1405 = vmatprep.subr.mxu0 0.0
      %1406 = vmatpush1.xpose.msra.mxu0 0.0
      %1407 = vmatprep.subr.mxu0 0.0
      %1408 = vmatpush1.xpose.msra.mxu0 0.0
      %1409 = vmatprep.subr.mxu0 0.0
      %1410 = vmatpush1.xpose.msra.mxu0 0.0
      %1411 = vmatprep.subr.mxu0 0.0
      %1412 = vmatpush1.xpose.msra.mxu0 0.0
      %1413 = vmatprep.subr.mxu0 0.0
      %1414 = vmatpush1.xpose.msra.mxu0 0.0
      %1415 = vmatprep.subr.mxu0 0.0
      %1416 = vmatpush1.xpose.msra.mxu0 0.0
      %1417 = vmatprep.subr.mxu0 0.0
      %1418 = vmatpush1.xpose.msra.mxu0 0.0
      %1419 = vmatprep.subr.mxu0 0.0
      %1420 = vmatpush1.xpose.msra.mxu0 0.0
      %1421 = vmatprep.subr.mxu0 0.0
      %1422 = vmatpush1.xpose.msra.mxu0 0.0
      %1423 = vmatprep.subr.mxu0 0.0
      %1424 = vmatpush1.xpose.msra.mxu0 0.0
      %1425 = vmatprep.subr.mxu0 0.0
      %1426 = vmatpush1.xpose.msra.mxu0 0.0
      %1427 = vmatprep.subr.mxu0 0.0
      %1428 = vmatpush1.xpose.msra.mxu0 0.0
      %1429 = vmatprep.subr.mxu0 0.0
      %1430 = vmatpush1.xpose.msra.mxu0 0.0
      %1431 = vmatprep.subr.mxu0 0.0
      %1432 = vmatpush1.xpose.msra.mxu0 0.0
      %1433 = vmatprep.subr.mxu0 0.0
      %1434 = vmatpush1.xpose.msra.mxu0 0.0
      %1435 = vmatprep.subr.mxu0 0.0
      %1436 = vmatpush1.xpose.msra.mxu0 0.0
      %1437 = vmatprep.subr.mxu0 0.0
      %1438 = vmatpush1.xpose.msra.mxu0 0.0
      %1439 = vmatprep.mubr.f32.mxu0 0.0
      %1440 = vmatmul.mubr.f32.gmra.mrb[0].mxu0 %v1371
      %v1441 = vpop.f32.mrb[0].mxu0
      %v1442 = vadd.f32 0.0, %v1441
      %v1443 = vpop.f32.mrb[0].mxu0
      %1444 = vdwg.mxu0
      %v1445 = vsel %vm866, %v1442, -1e+09
      %v1446 = vsel %vm871, %v1445, -inf
      %1447 = vmax.xlane.f32.xlu0 %v1446
      %v1448 = vpop.xlane.xlu0 %1447
      %v1449 = vsub.f32 %v1445, %v1448
      %v1450 = vmul.f32 %v1449, 1.442695
      %v1451 = vpow.pop %v1450
      %v1452 = vsel %vm871, %v1451, 0.0
      %1453 = vadd.xlane.f32.xlu0 %v1452
      %v1454 = vpop.xlane.xlu0 %1453
      %v1455 = vrcp.pop %v1454
      %v1456 = vmul.f32 %v1451, %v1455
      %1457 = vrot.lane.b32.xlu0 %v861, 40
      %v1458 = vpop.permute.xlu0 %1457
      %v1461 = vsel %vm871, %v1456, 0
      %1463 = vmatprep.subr.mxu0 0.0
      %1464 = vmatpush1.msra.mxu0 %v1458
      %1465 = vmatprep.subr.mxu0 0.0
      %1466 = vmatpush1.msra.mxu0 0.0
      %1467 = vmatprep.subr.mxu0 0.0
      %1468 = vmatpush1.msra.mxu0 0.0
      %1469 = vmatprep.subr.mxu0 0.0
      %1470 = vmatpush1.msra.mxu0 0.0
      %1471 = vmatprep.subr.mxu0 0.0
      %1472 = vmatpush1.msra.mxu0 0.0
      %1473 = vmatprep.subr.mxu0 0.0
      %1474 = vmatpush1.msra.mxu0 0.0
      %1475 = vmatprep.subr.mxu0 0.0
      %1476 = vmatpush1.msra.mxu0 0.0
      %1477 = vmatprep.subr.mxu0 0.0
      %1478 = vmatpush1.msra.mxu0 0.0
      %1479 = vmatprep.subr.mxu0 0.0
      %1480 = vmatpush1.msra.mxu0 0.0
      %1481 = vmatprep.subr.mxu0 0.0
      %1482 = vmatpush1.msra.mxu0 0.0
      %1483 = vmatprep.subr.mxu0 0.0
      %1484 = vmatpush1.msra.mxu0 0.0
      %1485 = vmatprep.subr.mxu0 0.0
      %1486 = vmatpush1.msra.mxu0 0.0
      %1487 = vmatprep.subr.mxu0 0.0
      %1488 = vmatpush1.msra.mxu0 0.0
      %1489 = vmatprep.subr.mxu0 0.0
      %1490 = vmatpush1.msra.mxu0 0.0
      %1491 = vmatprep.subr.mxu0 0.0
      %1492 = vmatpush1.msra.mxu0 0.0
      %1493 = vmatprep.subr.mxu0 0.0
      %1494 = vmatpush1.msra.mxu0 0.0
      %1495 = vmatprep.subr.mxu0 0.0
      %1496 = vmatpush1.msra.mxu0 0.0
      %1497 = vmatprep.subr.mxu0 0.0
      %1498 = vmatpush1.msra.mxu0 0.0
      %1499 = vmatprep.subr.mxu0 0.0
      %1500 = vmatpush1.msra.mxu0 0.0
      %1501 = vmatprep.subr.mxu0 0.0
      %1502 = vmatpush1.msra.mxu0 0.0
      %1503 = vmatprep.subr.mxu0 0.0
      %1504 = vmatpush1.msra.mxu0 0.0
      %1505 = vmatprep.subr.mxu0 0.0
      %1506 = vmatpush1.msra.mxu0 0.0
      %1507 = vmatprep.subr.mxu0 0.0
      %1508 = vmatpush1.msra.mxu0 0.0
      %1509 = vmatprep.subr.mxu0 0.0
      %1510 = vmatpush1.msra.mxu0 0.0
      %1511 = vmatprep.subr.mxu0 0.0
      %1512 = vmatpush1.msra.mxu0 0.0
      %1513 = vmatprep.subr.mxu0 0.0
      %1514 = vmatpush1.msra.mxu0 0.0
      %1515 = vmatprep.subr.mxu0 0.0
      %1516 = vmatpush1.msra.mxu0 0.0
      %1517 = vmatprep.subr.mxu0 0.0
      %1518 = vmatpush1.msra.mxu0 0.0
      %1519 = vmatprep.subr.mxu0 0.0
      %1520 = vmatpush1.msra.mxu0 0.0
      %1521 = vmatprep.subr.mxu0 0.0
      %1522 = vmatpush1.msra.mxu0 0.0
      %1523 = vmatprep.subr.mxu0 0.0
      %1524 = vmatpush1.msra.mxu0 0.0
      %1525 = vmatprep.subr.mxu0 0.0
      %1526 = vmatpush1.msra.mxu0 0.0
      %1527 = vmatprep.mubr.f32.mxu0 0.0
      %1528 = vmatmul.mubr.f32.gmra.mrb[0].mxu0 %v1461
      %v1529 = vpop.f32.mrb[0].mxu0
      %v1530 = vadd.f32 0.0, %v1529
      %v1531 = vpop.f32.mrb[0].mxu0
      %1532 = vdwg.mxu0
      %1534 = vrot.lane.b32.xlu0 %v1198, 8
      %v1535 = vpop.permute.xlu0 %1534
      %1538 = vrot.lane.b32.xlu0 %v1364, 16
      %v1539 = vpop.permute.xlu0 %1538
      %1542 = vrot.lane.b32.xlu0 %v1530, 24
      %v1543 = vpop.permute.xlu0 %1542
      %v1545 = vsel %vm871, %v1032, %v1535
      %vm1546 = vcmask 130048
      %v1547 = vsel %vm1546, %v1545, %v1539
      %vm1548 = vcmask 195584
      %v1549 = vsel %vm1548, %v1547, %v1543
      %v1550 = vld [vmem:[%s597] sm:$0xff]
      %v1551 = vld [vmem:[%s597 + $0x8] sm:$0xff]
      %v1552 = vld [vmem:[%s597 + $0x10] sm:$0xff]
      %v1553 = vld [vmem:[%s597 + $0x18] sm:$0xff]
      %v1554 = vld [vmem:[%s600] sm:$0x1]
      %v1556 = vlaneseq
      %v1557 = vshrl.u32 %v1556, 7
      %v1558 = vsub.s32 0, %v1557
      %v1559 = vrot.slane %v1554, %v1558
      %v1562 = vsel %vm755, %v1549, 0
      %1564 = vmatprep.subr.mxu0 0.0
      %1565 = vmatpush1.msra.mxu0 %v1550
      %1566 = vmatprep.subr.mxu0 0.0
      %1567 = vmatpush1.msra.mxu0 %v1551
      %1568 = vmatprep.subr.mxu0 0.0
      %1569 = vmatpush1.msra.mxu0 %v1552
      %1570 = vmatprep.subr.mxu0 0.0
      %1571 = vmatpush1.msra.mxu0 %v1553
      %1572 = vmatprep.subr.mxu0 0.0
      %1573 = vmatpush1.msra.mxu0 0.0
      %1574 = vmatprep.subr.mxu0 0.0
      %1575 = vmatpush1.msra.mxu0 0.0
      %1576 = vmatprep.subr.mxu0 0.0
      %1577 = vmatpush1.msra.mxu0 0.0
      %1578 = vmatprep.subr.mxu0 0.0
      %1579 = vmatpush1.msra.mxu0 0.0
      %1580 = vmatprep.subr.mxu0 0.0
      %1581 = vmatpush1.msra.mxu0 0.0
      %1582 = vmatprep.subr.mxu0 0.0
      %1583 = vmatpush1.msra.mxu0 0.0
      %1584 = vmatprep.subr.mxu0 0.0
      %1585 = vmatpush1.msra.mxu0 0.0
      %1586 = vmatprep.subr.mxu0 0.0
      %1587 = vmatpush1.msra.mxu0 0.0
      %1588 = vmatprep.subr.mxu0 0.0
      %1589 = vmatpush1.msra.mxu0 0.0
      %1590 = vmatprep.subr.mxu0 0.0
      %1591 = vmatpush1.msra.mxu0 0.0
      %1592 = vmatprep.subr.mxu0 0.0
      %1593 = vmatpush1.msra.mxu0 0.0
      %1594 = vmatprep.subr.mxu0 0.0
      %1595 = vmatpush1.msra.mxu0 0.0
      %1596 = vmatprep.subr.mxu0 0.0
      %1597 = vmatpush1.msra.mxu0 0.0
      %1598 = vmatprep.subr.mxu0 0.0
      %1599 = vmatpush1.msra.mxu0 0.0
      %1600 = vmatprep.subr.mxu0 0.0
      %1601 = vmatpush1.msra.mxu0 0.0
      %1602 = vmatprep.subr.mxu0 0.0
      %1603 = vmatpush1.msra.mxu0 0.0
      %1604 = vmatprep.subr.mxu0 0.0
      %1605 = vmatpush1.msra.mxu0 0.0
      %1606 = vmatprep.subr.mxu0 0.0
      %1607 = vmatpush1.msra.mxu0 0.0
      %1608 = vmatprep.subr.mxu0 0.0
      %1609 = vmatpush1.msra.mxu0 0.0
      %1610 = vmatprep.subr.mxu0 0.0
      %1611 = vmatpush1.msra.mxu0 0.0
      %1612 = vmatprep.subr.mxu0 0.0
      %1613 = vmatpush1.msra.mxu0 0.0
      %1614 = vmatprep.subr.mxu0 0.0
      %1615 = vmatpush1.msra.mxu0 0.0
      %1616 = vmatprep.subr.mxu0 0.0
      %1617 = vmatpush1.msra.mxu0 0.0
      %1618 = vmatprep.subr.mxu0 0.0
      %1619 = vmatpush1.msra.mxu0 0.0
      %1620 = vmatprep.subr.mxu0 0.0
      %1621 = vmatpush1.msra.mxu0 0.0
      %1622 = vmatprep.subr.mxu0 0.0
      %1623 = vmatpush1.msra.mxu0 0.0
      %1624 = vmatprep.subr.mxu0 0.0
      %1625 = vmatpush1.msra.mxu0 0.0
      %1626 = vmatprep.subr.mxu0 0.0
      %1627 = vmatpush1.msra.mxu0 0.0
      %1628 = vmatprep.mubr.f32.mxu0 0.0
      %1629 = vmatmul.mubr.f32.gmra.mrb[0].mxu0 %v1562
      %v1630 = vpop.f32.mrb[0].mxu0
      %v1631 = vadd.f32 %v1559, %v1630
      %v1632 = vpop.f32.mrb[0].mxu0
      %1633 = vdwg.mxu0
      %v1634 = vadd.f32 %v754, %v1631
      %v1635 = vsel %vm755, %v1634, 0.0
      %1636 = vadd.xlane.f32.xlu0 %v1635
      %v1637 = vpop.xlane.xlu0 %1636
      %v1638 = vmul.f32 %v1637, %v759
      %v1639 = vsub.f32 %v1634, %v1638
      %v1640 = vmul.f32 %v1639, %v1639
      %v1641 = vsel %vm755, %v1640, 0.0
      %1642 = vadd.xlane.f32.xlu0 %v1641
      %v1643 = vpop.xlane.xlu0 %1642
      %v1644 = vmul.f32 %v1643, %v759
      %v1645 = vadd.f32 %v1644, 1e-05
      %v1646 = vrsqrt.pop %v1645
      %v1647 = vmul.f32 %v1639, %v1646
      %v1648 = vlaneseq
      %v1649 = vshrl.u32 %v1648, 7
      %v1650 = vsub.s32 2, %v1649
      %v1651 = vrot.slane %v622, %v1650
      %v1652 = vmul.f32 %v1647, %v1651
      %v1653 = vlaneseq
      %v1654 = vshrl.u32 %v1653, 7
      %v1655 = vsub.s32 3, %v1654
      %v1656 = vrot.slane %v622, %v1655
      %v1657 = vadd.f32 %v1652, %v1656
      %v1658 = vld [vmem:[%s605] sm:$0xff]
      %v1659 = vld [vmem:[%s605 + $0x8] sm:$0xff]
      %v1660 = vld [vmem:[%s605 + $0x10] sm:$0xff]
      %v1661 = vld [vmem:[%s605 + $0x18] sm:$0xff]
      %v1662 = vld [vmem:[%s608] sm:$0x1]
      %v1664 = vlaneseq
      %v1665 = vshrl.u32 %v1664, 7
      %v1666 = vsub.s32 0, %v1665
      %v1667 = vrot.slane %v1662, %v1666
      %v1670 = vsel %vm755, %v1657, 0
      %1672 = vmatprep.subr.mxu0 0.0
      %1673 = vmatpush1.msra.mxu0 %v1658
      %1674 = vmatprep.subr.mxu0 0.0
      %1675 = vmatpush1.msra.mxu0 %v1659
      %1676 = vmatprep.subr.mxu0 0.0
      %1677 = vmatpush1.msra.mxu0 %v1660
      %1678 = vmatprep.subr.mxu0 0.0
      %1679 = vmatpush1.msra.mxu0 %v1661
      %1680 = vmatprep.subr.mxu0 0.0
      %1681 = vmatpush1.msra.mxu0 0.0
      %1682 = vmatprep.subr.mxu0 0.0
      %1683 = vmatpush1.msra.mxu0 0.0
      %1684 = vmatprep.subr.mxu0 0.0
      %1685 = vmatpush1.msra.mxu0 0.0
      %1686 = vmatprep.subr.mxu0 0.0
      %1687 = vmatpush1.msra.mxu0 0.0
      %1688 = vmatprep.subr.mxu0 0.0
      %1689 = vmatpush1.msra.mxu0 0.0
      %1690 = vmatprep.subr.mxu0 0.0
      %1691 = vmatpush1.msra.mxu0 0.0
      %1692 = vmatprep.subr.mxu0 0.0
      %1693 = vmatpush1.msra.mxu0 0.0
      %1694 = vmatprep.subr.mxu0 0.0
      %1695 = vmatpush1.msra.mxu0 0.0
      %1696 = vmatprep.subr.mxu0 0.0
      %1697 = vmatpush1.msra.mxu0 0.0
      %1698 = vmatprep.subr.mxu0 0.0
      %1699 = vmatpush1.msra.mxu0 0.0
      %1700 = vmatprep.subr.mxu0 0.0
      %1701 = vmatpush1.msra.mxu0 0.0
      %1702 = vmatprep.subr.mxu0 0.0
      %1703 = vmatpush1.msra.mxu0 0.0
      %1704 = vmatprep.subr.mxu0 0.0
      %1705 = vmatpush1.msra.mxu0 0.0
      %1706 = vmatprep.subr.mxu0 0.0
      %1707 = vmatpush1.msra.mxu0 0.0
      %1708 = vmatprep.subr.mxu0 0.0
      %1709 = vmatpush1.msra.mxu0 0.0
      %1710 = vmatprep.subr.mxu0 0.0
      %1711 = vmatpush1.msra.mxu0 0.0
      %1712 = vmatprep.subr.mxu0 0.0
      %1713 = vmatpush1.msra.mxu0 0.0
      %1714 = vmatprep.subr.mxu0 0.0
      %1715 = vmatpush1.msra.mxu0 0.0
      %1716 = vmatprep.subr.mxu0 0.0
      %1717 = vmatpush1.msra.mxu0 0.0
      %1718 = vmatprep.subr.mxu0 0.0
      %1719 = vmatpush1.msra.mxu0 0.0
      %1720 = vmatprep.subr.mxu0 0.0
      %1721 = vmatpush1.msra.mxu0 0.0
      %1722 = vmatprep.subr.mxu0 0.0
      %1723 = vmatpush1.msra.mxu0 0.0
      %1724 = vmatprep.subr.mxu0 0.0
      %1725 = vmatpush1.msra.mxu0 0.0
      %1726 = vmatprep.subr.mxu0 0.0
      %1727 = vmatpush1.msra.mxu0 0.0
      %1728 = vmatprep.subr.mxu0 0.0
      %1729 = vmatpush1.msra.mxu0 0.0
      %1730 = vmatprep.subr.mxu0 0.0
      %1731 = vmatpush1.msra.mxu0 0.0
      %1732 = vmatprep.subr.mxu0 0.0
      %1733 = vmatpush1.msra.mxu0 0.0
      %1734 = vmatprep.subr.mxu0 0.0
      %1735 = vmatpush1.msra.mxu0 0.0
      %1736 = vmatprep.mubr.f32.mxu0 0.0
      %1737 = vmatmul.mubr.f32.gmra.mrb[0].mxu0 %v1670
      %v1738 = vpop.f32.mrb[0].mxu0
      %v1739 = vadd.f32 %v1667, %v1738
      %v1740 = vpop.f32.mrb[0].mxu0
      %1741 = vdwg.mxu0
      %v1742 = vmul.f32 %v1739, 1.702
      %v1743 = vxor.u32 %v1742, 2147483648
      %v1744 = vmul.f32 %v1743, 1.442695
      %v1745 = vpow.pop %v1744
      %v1746 = vadd.f32 %v1745, 1.0
      %v1747 = vrcp.pop %v1746
      %v1748 = vmul.f32 1.0, %v1747
      %v1749 = vmul.f32 %v1739, %v1748
      %v1750 = vld [vmem:[%s613] sm:$0xff]
      %v1751 = vld [vmem:[%s613 + $0x8] sm:$0xff]
      %v1752 = vld [vmem:[%s613 + $0x10] sm:$0xff]
      %v1753 = vld [vmem:[%s613 + $0x18] sm:$0xff]
      %v1754 = vld [vmem:[%s613 + $0x20] sm:$0xff]
      %v1755 = vld [vmem:[%s613 + $0x28] sm:$0xff]
      %v1756 = vld [vmem:[%s613 + $0x30] sm:$0xff]
      %v1757 = vld [vmem:[%s613 + $0x38] sm:$0xff]
      %v1758 = vld [vmem:[%s613 + $0x40] sm:$0xff]
      %v1759 = vld [vmem:[%s613 + $0x48] sm:$0xff]
      %v1760 = vld [vmem:[%s613 + $0x50] sm:$0xff]
      %v1761 = vld [vmem:[%s613 + $0x58] sm:$0xff]
      %v1762 = vld [vmem:[%s613 + $0x60] sm:$0xff]
      %v1763 = vld [vmem:[%s613 + $0x68] sm:$0xff]
      %v1764 = vld [vmem:[%s613 + $0x70] sm:$0xff]
      %v1765 = vld [vmem:[%s613 + $0x78] sm:$0xff]
      %v1766 = vld [vmem:[%s616] sm:$0x1]
      %v1768 = vlaneseq
      %v1769 = vshrl.u32 %v1768, 7
      %v1770 = vsub.s32 0, %v1769
      %v1771 = vrot.slane %v1766, %v1770
      %1773 = vmatprep.subr.mxu0 0.0
      %1774 = vmatpush1.msra.mxu0 %v1750
      %1775 = vmatprep.subr.mxu0 0.0
      %1776 = vmatpush1.msra.mxu0 %v1751
      %1777 = vmatprep.subr.mxu0 0.0
      %1778 = vmatpush1.msra.mxu0 %v1752
      %1779 = vmatprep.subr.mxu0 0.0
      %1780 = vmatpush1.msra.mxu0 %v1753
      %1781 = vmatprep.subr.mxu0 0.0
      %1782 = vmatpush1.msra.mxu0 %v1754
      %1783 = vmatprep.subr.mxu0 0.0
      %1784 = vmatpush1.msra.mxu0 %v1755
      %1785 = vmatprep.subr.mxu0 0.0
      %1786 = vmatpush1.msra.mxu0 %v1756
      %1787 = vmatprep.subr.mxu0 0.0
      %1788 = vmatpush1.msra.mxu0 %v1757
      %1789 = vmatprep.subr.mxu0 0.0
      %1790 = vmatpush1.msra.mxu0 %v1758
      %1791 = vmatprep.subr.mxu0 0.0
      %1792 = vmatpush1.msra.mxu0 %v1759
      %1793 = vmatprep.subr.mxu0 0.0
      %1794 = vmatpush1.msra.mxu0 %v1760
      %1795 = vmatprep.subr.mxu0 0.0
      %1796 = vmatpush1.msra.mxu0 %v1761
      %1797 = vmatprep.subr.mxu0 0.0
      %1798 = vmatpush1.msra.mxu0 %v1762
      %1799 = vmatprep.subr.mxu0 0.0
      %1800 = vmatpush1.msra.mxu0 %v1763
      %1801 = vmatprep.subr.mxu0 0.0
      %1802 = vmatpush1.msra.mxu0 %v1764
      %1803 = vmatprep.subr.mxu0 0.0
      %1804 = vmatpush1.msra.mxu0 %v1765
      %1805 = vmatprep.subr.mxu0 0.0
      %1806 = vmatpush1.msra.mxu0 0.0
      %1807 = vmatprep.subr.mxu0 0.0
      %1808 = vmatpush1.msra.mxu0 0.0
      %1809 = vmatprep.subr.mxu0 0.0
      %1810 = vmatpush1.msra.mxu0 0.0
      %1811 = vmatprep.subr.mxu0 0.0
      %1812 = vmatpush1.msra.mxu0 0.0
      %1813 = vmatprep.subr.mxu0 0.0
      %1814 = vmatpush1.msra.mxu0 0.0
      %1815 = vmatprep.subr.mxu0 0.0
      %1816 = vmatpush1.msra.mxu0 0.0
      %1817 = vmatprep.subr.mxu0 0.0
      %1818 = vmatpush1.msra.mxu0 0.0
      %1819 = vmatprep.subr.mxu0 0.0
      %1820 = vmatpush1.msra.mxu0 0.0
      %1821 = vmatprep.subr.mxu0 0.0
      %1822 = vmatpush1.msra.mxu0 0.0
      %1823 = vmatprep.subr.mxu0 0.0
      %1824 = vmatpush1.msra.mxu0 0.0
      %1825 = vmatprep.subr.mxu0 0.0
      %1826 = vmatpush1.msra.mxu0 0.0
      %1827 = vmatprep.subr.mxu0 0.0
      %1828 = vmatpush1.msra.mxu0 0.0
      %1829 = vmatprep.subr.mxu0 0.0
      %1830 = vmatpush1.msra.mxu0 0.0
      %1831 = vmatprep.subr.mxu0 0.0
      %1832 = vmatpush1.msra.mxu0 0.0
      %1833 = vmatprep.subr.mxu0 0.0
      %1834 = vmatpush1.msra.mxu0 0.0
      %1835 = vmatprep.subr.mxu0 0.0
      %1836 = vmatpush1.msra.mxu0 0.0
      %1837 = vmatprep.mubr.f32.mxu0 0.0
      %1838 = vmatmul.mubr.f32.gmra.mrb[0].mxu0 %v1749
      %v1839 = vpop.f32.mrb[0].mxu0
      %v1840 = vadd.f32 %v1771, %v1839
      %v1841 = vpop.f32.mrb[0].mxu0
      %1842 = vdwg.mxu0
      %v1843 = vadd.f32 %v1634, %v1840
      %1844 = vst.msk [vmem:[#allocation2] sm:$0xff] %vm755, %v1843
      %p1845 = scmp.eq.s32.totalorder %s29, 1
      // Predicated region
      $region77: #{clip_forward.1} parent=71 // pred_check
        %p1846 = pneg %p1845
      $region78: #{clip_forward.1} parent=71 // pred_check_branch
        %1848 = sbr.rel (%p1846) target = $region80
      $region79: #{clip_forward.1} parent=71 // pred_region
        %v1849 = vsel %vm755, %v1843, 0.0
        %1850 = vadd.xlane.f32.xlu0 %v1849
        %v1851 = vpop.xlane.xlu0 %1850
        %v1852 = vmul.f32 %v1851, %v759
        %v1853 = vsub.f32 %v1843, %v1852
        %v1854 = vmul.f32 %v1853, %v1853
        %v1855 = vsel %vm755, %v1854, 0.0
        %1856 = vadd.xlane.f32.xlu0 %v1855
        %v1857 = vpop.xlane.xlu0 %1856
        %v1858 = vmul.f32 %v1857, %v759
        %v1859 = vadd.f32 %v1858, 1e-05
        %v1860 = vrsqrt.pop %v1859
        %v1861 = vmul.f32 %v1853, %v1860
        %v1862 = vlaneseq
        %v1863 = vshrl.u32 %v1862, 7
        %v1864 = vsub.s32 2, %v1863
        %v1865 = vrot.slane %v621, %v1864
        %v1866 = vmul.f32 %v1861, %v1865
        %v1867 = vlaneseq
        %v1868 = vshrl.u32 %v1867, 7
        %v1869 = vsub.s32 3, %v1868
        %v1870 = vrot.slane %v621, %v1869
        %v1871 = vadd.f32 %v1866, %v1870
        %1872 = vst.msk [vmem:[%s620] sm:$0xff] %vm755, %v1871
      $region80: #{clip_forward.1} parent=71 // pred_fallthru
        _
      %p1873 = scmp.lt.s32.totalorder %s28, 1
      %s1874 = scalar_select %p1873, %s28, 1
      %s1875 = smul.addr %s1874, 8
      %s1876 = scalar_lea.vmem %s13, %s1875
      // Predicated region
      $region81: #{clip_forward.1} parent=71 // pred_check
        %p1877 = pneg %p382
      $region82: #{clip_forward.1} parent=71 // pred_check_branch
        %1879 = sbr.rel (%p1877) target = $region84
      $region83: #{clip_forward.1} parent=71 // pred_region
        _
      $region84: #{clip_forward.1} parent=71 // pred_fallthru
        _
    $region72: #{clip_forward.1} parent=5 // pred_fallthru
      _
    %p1880 = scmp.le.s32.totalorder 2, %s19
    // Predicated region
    $region85: #{clip_forward.1} parent=5 // pred_check
      %p1881 = pneg %p1880
    $region86: #{clip_forward.1} parent=5 // pred_check_branch
      %1883 = sbr.rel (%p1881) target = $region88
    $region87: #{clip_forward.1} parent=5 // pred_region
      %s1884 = ssub.s32 %s19, 2
      // Predicated region
      $region89: #{clip_forward.1} parent=87 // pred_check
        %p1885 = pneg %p388
      $region90: #{clip_forward.1} parent=87 // pred_check_branch
        %1887 = sbr.rel (%p1885) target = $region92
      $region91: #{clip_forward.1} parent=87 // pred_region
        %p1888 = scmp.lt.s32.totalorder %s30, 1
        %s1889 = scalar_select %p1888, %s30, 1
        %s1890 = smul.addr %s1889, 8
        %s1891 = scalar_lea.vmem %s13, %s1890
      $region92: #{clip_forward.1} parent=87 // pred_fallthru
        _
    $region88: #{clip_forward.1} parent=5 // pred_fallthru
      _
  $region6: #{clip_forward.1} parent=0 // loop_footer
    %s23 = sadd.s32 1, %s19
  $region7: #{clip_forward.1} parent=0 // loop_footer_branch
    %18 = sbr.rel target = $region3
  $region8: #{clip_forward.1} parent=0 // loop_exit
    _

</llo_original>
